<compile_context>
chip_gen: v6e
topology: v6e:2x2x1
jax: 0.10.0
libtpu: 0.0.40
codegen_flags: <defaults>
</compile_context>

<pallas_src>
import jax
import jax.numpy as jnp
from jax.experimental import pallas as pl
from jax.experimental.pallas import tpu as pltpu


def _round_up(x, m):
    return ((x + m - 1) // m) * m


def lstm_head_kernel(x_ref, wih_ref, whh_ref, b_ref, wout_ref, bout_ref,
                     out_ref, h_scr, c_scr):
    # x_ref:    (1, Tt*Bp, E)  bf16  time-major tile, batch-fastest within tile
    # wih_ref:  (E, 4Hp)       bf16  W_ih^T, gate-major columns
    # whh_ref:  (Hp, 4Hp)      bf16  W_hh^T
    # b_ref:    (1, 4Hp)       f32   b_ih + b_hh (padded gates = 0)
    # wout_ref: (Hp, Cp)       bf16  W_out^T
    # bout_ref: (1, Cp)        f32   b_out (padded classes = -1e9)
    # out_ref:  (Bp, Cp)       f32   log-probabilities (resident across grid)
    # h_scr/c_scr: (Bp, Hp)    f32   recurrent state carried across grid steps
    bp, hp = h_scr.shape
    tt = x_ref.shape[1] // bp
    t_idx = pl.program_id(0)

    @pl.when(t_idx == 0)
    def _init():
        h_scr[...] = jnp.zeros_like(h_scr)
        c_scr[...] = jnp.zeros_like(c_scr)

    # Hoisted, time-parallel input projection: ONE MXU matmul for all tt
    # timesteps in this tile, with the combined bias folded in once.
    gx = jnp.dot(x_ref[0], wih_ref[...],
                 preferred_element_type=jnp.float32) + b_ref[...]   # (tt*bp, 4hp) f32

    whh = whh_ref[...]          # bf16 MXU operand
    h = h_scr[...]              # f32 state
    c = c_scr[...]
    for i in range(tt):         # fully unrolled: static trip count
        # Serial critical path: only the hidden-to-hidden matmul per step.
        gates = gx[i * bp:(i + 1) * bp, :] + jnp.dot(
            h.astype(whh.dtype), whh, preferred_element_type=jnp.float32)
        # Gate slices are lane-aligned because hp is a multiple of 128.
        i_g = jax.nn.sigmoid(gates[:, 0 * hp:1 * hp])
        f_g = jax.nn.sigmoid(gates[:, 1 * hp:2 * hp])
        g_g = jnp.tanh(gates[:, 2 * hp:3 * hp])
        o_g = jax.nn.sigmoid(gates[:, 3 * hp:4 * hp])
        c = f_g * c + i_g * g_g
        h = o_g * jnp.tanh(c)
    h_scr[...] = h
    c_scr[...] = c

    @pl.when(t_idx == pl.num_programs(0) - 1)
    def _finalize():
        # dropout_layer: identity in eval mode.
        logits = jnp.dot(h.astype(wout_ref.dtype), wout_ref[...],
                         preferred_element_type=jnp.float32) + bout_ref[...]
        m = jnp.max(logits, axis=-1, keepdims=True)
        lse = m + jnp.log(jnp.sum(jnp.exp(logits - m), axis=-1, keepdims=True))
        out_ref[...] = logits - lse


def seq_classifier_forward(tokens, params, *, time_tile=4):
    """tokens: (B, T) int32.  Returns (B, num_class) log-probs."""
    B, T = tokens.shape
    E = params["embeddings"].shape[1]
    H = params["w_hh"].shape[1]
    C = params["b_out"].shape[0]

    Bp = _round_up(max(B, 1), 8)     # 8 sublanes
    Hp = _round_up(H, 128)           # lane-aligned gate boundaries (exact padding)
    Cp = _round_up(C, 128)           # lane-dense output store
    Tt = min(time_tile, T)
    assert T % Tt == 0, "demo requires T divisible by the time tile"
    nT = T // Tt

    f32 = jnp.float32
    bf16 = jnp.bfloat16

    # Pad batch with token 0; padded rows are discarded at the end.
    tokens_p = jnp.zeros((Bp, T), jnp.int32).at[:B, :].set(tokens)

    # Embedding lookup (XLA gather glue), produced directly time-major, then a
    # free reshape into (nT, Tt*Bp, E) tiles and bf16 cast for MXU/DMA.
    x = params["embeddings"][tokens_p.T]                  # (T, Bp, E) f32
    x = x.reshape(nT, Tt * Bp, E).astype(bf16)

    # Gate-aware padding H -> Hp: gate k occupies columns [k*Hp, k*Hp + H).
    wih = (jnp.zeros((E, 4, Hp), f32)
           .at[:, :, :H].set(params["w_ih"].T.reshape(E, 4, H))
           .reshape(E, 4 * Hp).astype(bf16))
    whh = (jnp.zeros((Hp, 4, Hp), f32)
           .at[:H, :, :H].set(params["w_hh"].T.reshape(H, 4, H))
           .reshape(Hp, 4 * Hp).astype(bf16))
    b = (jnp.zeros((4, Hp), f32)
         .at[:, :H].set((params["b_ih"] + params["b_hh"]).reshape(4, H))
         .reshape(1, 4 * Hp))
    wout = (jnp.zeros((Hp, Cp), f32)
            .at[:H, :C].set(params["w_out"].T).astype(bf16))
    # Padded classes get a large negative bias so they vanish in log-softmax.
    bout = jnp.full((1, Cp), -1e9, f32).at[0, :C].set(params["b_out"])

    out = pl.pallas_call(
        lstm_head_kernel,
        out_shape=jax.ShapeDtypeStruct((Bp, Cp), f32),
        grid_spec=pltpu.PrefetchScalarGridSpec(
            num_scalar_prefetch=0,
            grid=(nT,),
            in_specs=[
                pl.BlockSpec((1, Tt * Bp, E), lambda t: (t, 0, 0)),
                pl.BlockSpec((E, 4 * Hp), lambda t: (0, 0)),
                pl.BlockSpec((Hp, 4 * Hp), lambda t: (0, 0)),
                pl.BlockSpec((1, 4 * Hp), lambda t: (0, 0)),
                pl.BlockSpec((Hp, Cp), lambda t: (0, 0)),
                pl.BlockSpec((1, Cp), lambda t: (0, 0)),
            ],
            out_specs=pl.BlockSpec((Bp, Cp), lambda t: (0, 0)),
            scratch_shapes=[pltpu.VMEM((Bp, Hp), f32),
                            pltpu.VMEM((Bp, Hp), f32)],
        ),
        compiler_params=pltpu.CompilerParams(
            # Time axis is a serial recurrence -> "arbitrary".  For large real
            # batches add a leading "parallel" batch grid axis (v7x: 2 TCs).
            dimension_semantics=("arbitrary",),
            vmem_limit_bytes=32 * 1024 * 1024,
        ),
    )(x, wih, whh, b, wout, bout)
    return out[:B, :C]


def reference_forward(tokens, params):
    """Pure-JAX f32 reference matching PyTorch LSTM/Linear/LogSoftmax."""
    emb = params["embeddings"][tokens]
    x = jnp.transpose(emb, (1, 0, 2))  # (T, B, E)
    T, B, _ = x.shape
    H = params["w_hh"].shape[1]
    h = jnp.zeros((B, H), jnp.float32)
    c = jnp.zeros((B, H), jnp.float32)
    for t in range(T):
        gates = (
            x[t] @ params["w_ih"].T + params["b_ih"]
            + h @ params["w_hh"].T + params["b_hh"]
        )
        i_g = jax.nn.sigmoid(gates[:, 0:H])
        f_g = jax.nn.sigmoid(gates[:, H:2 * H])
        g_g = jnp.tanh(gates[:, 2 * H:3 * H])
        o_g = jax.nn.sigmoid(gates[:, 3 * H:4 * H])
        c = f_g * c + i_g * g_g
        h = o_g * jnp.tanh(c)
    logits = h @ params["w_out"].T + params["b_out"]
    return jax.nn.log_softmax(logits, axis=-1)


if __name__ == "__main__":
    # Small deterministic configuration.
    VOCAB, E, H, C = 20, 32, 32, 8       # vocab, input_feature_dim, hidden_size, num_class
    B, T = 2, 8                          # batch, sequence length
    # num_layers=1, bidirectional=False, dropout=0.0 (eval mode -> identity)

    key = jax.random.PRNGKey(0)
    ks = jax.random.split(key, 7)
    params = {
        "embeddings": jax.random.normal(ks[0], (VOCAB, E), jnp.float32) * 0.1,
        "w_ih": jax.random.normal(ks[1], (4 * H, E), jnp.float32) * 0.1,
        "w_hh": jax.random.normal(ks[2], (4 * H, H), jnp.float32) * 0.1,
        "b_ih": jax.random.normal(ks[3], (4 * H,), jnp.float32) * 0.1,
        "b_hh": jax.random.normal(ks[4], (4 * H,), jnp.float32) * 0.1,
        "w_out": jax.random.normal(ks[5], (C, H), jnp.float32) * 0.1,
        "b_out": jax.random.normal(ks[6], (C,), jnp.float32) * 0.1,
    }

    tokens = jax.random.randint(jax.random.PRNGKey(1), (B, T), 0, VOCAB, jnp.int32)

    out = seq_classifier_forward(tokens, params)
    out = jax.block_until_ready(out)

    ref = reference_forward(tokens, params)
    assert out.shape == (B, C)
    # bf16 MXU operands (f32 accumulation / f32 state) -> loosened tolerance.
    assert jnp.allclose(out, ref, atol=2e-2, rtol=2e-2), "mismatch vs reference"

    print("KERNEL_OK")
</pallas_src>

<mosaic_0001>
module attributes {stable_mosaic.version = 11 : i64} {
  func.func @lstm_head_kernel(%arg0: i32, %arg1: memref<1x32x32xbf16, #tpu.memory_space<vmem>>, %arg2: memref<32x512xbf16, #tpu.memory_space<vmem>>, %arg3: memref<128x512xbf16, #tpu.memory_space<vmem>>, %arg4: memref<1x512xf32, #tpu.memory_space<vmem>>, %arg5: memref<128x128xbf16, #tpu.memory_space<vmem>>, %arg6: memref<1x128xf32, #tpu.memory_space<vmem>>, %arg7: memref<8x128xf32, #tpu.memory_space<vmem>>, %arg8: memref<8x128xf32, #tpu.memory_space<vmem>>, %arg9: memref<8x128xf32, #tpu.memory_space<vmem>>) attributes {dimension_semantics = [#tpu.dimension_semantics<arbitrary>], iteration_bounds = array<i64: 2>, scalar_prefetch = 0 : i64, scratch_operands = 2 : i64, tpu.core_type = #tpu.core_type<tc>, window_params = [{transform_indices = @transform_0, window_bounds = array<i64: 1, 32, 32>}, {pipeline_mode = #tpu.pipeline_mode<synchronous>, transform_indices = @transform_1, window_bounds = array<i64: 32, 512>}, {pipeline_mode = #tpu.pipeline_mode<synchronous>, transform_indices = @transform_2, window_bounds = array<i64: 128, 512>}, {pipeline_mode = #tpu.pipeline_mode<synchronous>, transform_indices = @transform_3, window_bounds = array<i64: 1, 512>}, {pipeline_mode = #tpu.pipeline_mode<synchronous>, transform_indices = @transform_4, window_bounds = array<i64: 128, 128>}, {pipeline_mode = #tpu.pipeline_mode<synchronous>, transform_indices = @transform_5, window_bounds = array<i64: 1, 128>}, {pipeline_mode = #tpu.pipeline_mode<synchronous>, transform_indices = @transform_6, window_bounds = array<i64: 8, 128>}]} {
    %c0_i32 = arith.constant 0 : i32
    %0 = arith.cmpi eq, %arg0, %c0_i32 : i32
    %1 = arith.extui %0 : i1 to i32
    %c0_i32_0 = arith.constant 0 : i32
    %2 = arith.cmpi ne, %1, %c0_i32_0 : i32
    scf.if %2 {
      %cst_34 = arith.constant 0.000000e+00 : f32
      %134 = vector.broadcast %cst_34 : f32 to vector<8x128xf32>
      %c0_35 = arith.constant 0 : index
      %c0_36 = arith.constant 0 : index
      %135 = vector.load %arg8[%c0_35, %c0_36] : memref<8x128xf32, #tpu.memory_space<vmem>>, vector<8x128xf32>
      tpu.vector_store %arg8[%c0_35, %c0_36], %134 {strides = array<i32>} : memref<8x128xf32, #tpu.memory_space<vmem>>, vector<8x128xf32>,
      %cst_37 = arith.constant 0.000000e+00 : f32
      %136 = vector.broadcast %cst_37 : f32 to vector<8x128xf32>
      %c0_38 = arith.constant 0 : index
      %c0_39 = arith.constant 0 : index
      %137 = vector.load %arg9[%c0_38, %c0_39] : memref<8x128xf32, #tpu.memory_space<vmem>>, vector<8x128xf32>
      tpu.vector_store %arg9[%c0_38, %c0_39], %136 {strides = array<i32>} : memref<8x128xf32, #tpu.memory_space<vmem>>, vector<8x128xf32>,
    } else {
    }
    %c0 = arith.constant 0 : index
    %c0_1 = arith.constant 0 : index
    %c0_2 = arith.constant 0 : index
    %3 = vector.load %arg1[%c0, %c0_1, %c0_2] : memref<1x32x32xbf16, #tpu.memory_space<vmem>>, vector<1x32x32xbf16>
    %4 = vector.shape_cast %3 : vector<1x32x32xbf16> to vector<32x32xbf16>
    %c0_3 = arith.constant 0 : index
    %c0_4 = arith.constant 0 : index
    %5 = vector.load %arg2[%c0_3, %c0_4] : memref<32x512xbf16, #tpu.memory_space<vmem>>, vector<32x512xbf16>
    %cst = arith.constant dense<0.000000e+00> : vector<32x512xf32>
    %6 = tpu.matmul %4, %5, %cst {dimension_numbers = #tpu.dot_dimension_numbers<[1], [0], [0], [1], [0, 0, 1, 1], [], []>} : vector<32x32xbf16>, vector<32x512xbf16>, vector<32x512xf32> -> vector<32x512xf32>
    %c0_5 = arith.constant 0 : index
    %c0_6 = arith.constant 0 : index
    %7 = vector.load %arg4[%c0_5, %c0_6] : memref<1x512xf32, #tpu.memory_space<vmem>>, vector<1x512xf32>
    %8 = vector.broadcast %7 : vector<1x512xf32> to vector<32x512xf32>
    %9 = arith.addf %6, %8 : vector<32x512xf32>
    %c0_7 = arith.constant 0 : index
    %c0_8 = arith.constant 0 : index
    %10 = vector.load %arg3[%c0_7, %c0_8] : memref<128x512xbf16, #tpu.memory_space<vmem>>, vector<128x512xbf16>
    %c0_9 = arith.constant 0 : index
    %c0_10 = arith.constant 0 : index
    %11 = vector.load %arg8[%c0_9, %c0_10] : memref<8x128xf32, #tpu.memory_space<vmem>>, vector<8x128xf32>
    %c0_11 = arith.constant 0 : index
    %c0_12 = arith.constant 0 : index
    %12 = vector.load %arg9[%c0_11, %c0_12] : memref<8x128xf32, #tpu.memory_space<vmem>>, vector<8x128xf32>
    %13 = vector.extract_strided_slice %9 {offsets = [0, 0], sizes = [8, 512], strides = [1, 1]} : vector<32x512xf32> to vector<8x512xf32>
    %14 = arith.truncf %11 : vector<8x128xf32> to vector<8x128xbf16>
    %cst_13 = arith.constant dense<0.000000e+00> : vector<8x512xf32>
    %15 = tpu.matmul %14, %10, %cst_13 {dimension_numbers = #tpu.dot_dimension_numbers<[1], [0], [0], [1], [0, 0, 1, 1], [], []>} : vector<8x128xbf16>, vector<128x512xbf16>, vector<8x512xf32> -> vector<8x512xf32>
    %16 = arith.addf %13, %15 : vector<8x512xf32>
    %17 = vector.extract_strided_slice %16 {offsets = [0, 0], sizes = [8, 128], strides = [1, 1]} : vector<8x512xf32> to vector<8x128xf32>
    %18 = arith.negf %17 : vector<8x128xf32>
    %19 = math.exp %18 : vector<8x128xf32>
    %cst_14 = arith.constant 1.000000e+00 : f32
    %20 = vector.broadcast %cst_14 : f32 to vector<8x128xf32>
    %21 = arith.addf %20, %19 : vector<8x128xf32>
    %22 = arith.divf %20, %21 : vector<8x128xf32>
    %23 = vector.extract_strided_slice %16 {offsets = [0, 128], sizes = [8, 128], strides = [1, 1]} : vector<8x512xf32> to vector<8x128xf32>
    %24 = arith.negf %23 : vector<8x128xf32>
    %25 = math.exp %24 : vector<8x128xf32>
    %cst_15 = arith.constant 1.000000e+00 : f32
    %26 = vector.broadcast %cst_15 : f32 to vector<8x128xf32>
    %27 = arith.addf %26, %25 : vector<8x128xf32>
    %28 = arith.divf %26, %27 : vector<8x128xf32>
    %29 = vector.extract_strided_slice %16 {offsets = [0, 256], sizes = [8, 128], strides = [1, 1]} : vector<8x512xf32> to vector<8x128xf32>
    %30 = math.tanh %29 : vector<8x128xf32>
    %31 = vector.extract_strided_slice %16 {offsets = [0, 384], sizes = [8, 128], strides = [1, 1]} : vector<8x512xf32> to vector<8x128xf32>
    %32 = arith.negf %31 : vector<8x128xf32>
    %33 = math.exp %32 : vector<8x128xf32>
    %cst_16 = arith.constant 1.000000e+00 : f32
    %34 = vector.broadcast %cst_16 : f32 to vector<8x128xf32>
    %35 = arith.addf %34, %33 : vector<8x128xf32>
    %36 = arith.divf %34, %35 : vector<8x128xf32>
    %37 = arith.mulf %28, %12 : vector<8x128xf32>
    %38 = arith.mulf %22, %30 : vector<8x128xf32>
    %39 = arith.addf %37, %38 : vector<8x128xf32>
    %40 = math.tanh %39 : vector<8x128xf32>
    %41 = arith.mulf %36, %40 : vector<8x128xf32>
    %42 = vector.extract_strided_slice %9 {offsets = [8, 0], sizes = [8, 512], strides = [1, 1]} : vector<32x512xf32> to vector<8x512xf32>
    %43 = arith.truncf %41 : vector<8x128xf32> to vector<8x128xbf16>
    %cst_17 = arith.constant dense<0.000000e+00> : vector<8x512xf32>
    %44 = tpu.matmul %43, %10, %cst_17 {dimension_numbers = #tpu.dot_dimension_numbers<[1], [0], [0], [1], [0, 0, 1, 1], [], []>} : vector<8x128xbf16>, vector<128x512xbf16>, vector<8x512xf32> -> vector<8x512xf32>
    %45 = arith.addf %42, %44 : vector<8x512xf32>
    %46 = vector.extract_strided_slice %45 {offsets = [0, 0], sizes = [8, 128], strides = [1, 1]} : vector<8x512xf32> to vector<8x128xf32>
    %47 = arith.negf %46 : vector<8x128xf32>
    %48 = math.exp %47 : vector<8x128xf32>
    %cst_18 = arith.constant 1.000000e+00 : f32
    %49 = vector.broadcast %cst_18 : f32 to vector<8x128xf32>
    %50 = arith.addf %49, %48 : vector<8x128xf32>
    %51 = arith.divf %49, %50 : vector<8x128xf32>
    %52 = vector.extract_strided_slice %45 {offsets = [0, 128], sizes = [8, 128], strides = [1, 1]} : vector<8x512xf32> to vector<8x128xf32>
    %53 = arith.negf %52 : vector<8x128xf32>
    %54 = math.exp %53 : vector<8x128xf32>
    %cst_19 = arith.constant 1.000000e+00 : f32
    %55 = vector.broadcast %cst_19 : f32 to vector<8x128xf32>
    %56 = arith.addf %55, %54 : vector<8x128xf32>
    %57 = arith.divf %55, %56 : vector<8x128xf32>
    %58 = vector.extract_strided_slice %45 {offsets = [0, 256], sizes = [8, 128], strides = [1, 1]} : vector<8x512xf32> to vector<8x128xf32>
    %59 = math.tanh %58 : vector<8x128xf32>
    %60 = vector.extract_strided_slice %45 {offsets = [0, 384], sizes = [8, 128], strides = [1, 1]} : vector<8x512xf32> to vector<8x128xf32>
    %61 = arith.negf %60 : vector<8x128xf32>
    %62 = math.exp %61 : vector<8x128xf32>
    %cst_20 = arith.constant 1.000000e+00 : f32
    %63 = vector.broadcast %cst_20 : f32 to vector<8x128xf32>
    %64 = arith.addf %63, %62 : vector<8x128xf32>
    %65 = arith.divf %63, %64 : vector<8x128xf32>
    %66 = arith.mulf %57, %39 : vector<8x128xf32>
    %67 = arith.mulf %51, %59 : vector<8x128xf32>
    %68 = arith.addf %66, %67 : vector<8x128xf32>
    %69 = math.tanh %68 : vector<8x128xf32>
    %70 = arith.mulf %65, %69 : vector<8x128xf32>
    %71 = vector.extract_strided_slice %9 {offsets = [16, 0], sizes = [8, 512], strides = [1, 1]} : vector<32x512xf32> to vector<8x512xf32>
    %72 = arith.truncf %70 : vector<8x128xf32> to vector<8x128xbf16>
    %cst_21 = arith.constant dense<0.000000e+00> : vector<8x512xf32>
    %73 = tpu.matmul %72, %10, %cst_21 {dimension_numbers = #tpu.dot_dimension_numbers<[1], [0], [0], [1], [0, 0, 1, 1], [], []>} : vector<8x128xbf16>, vector<128x512xbf16>, vector<8x512xf32> -> vector<8x512xf32>
    %74 = arith.addf %71, %73 : vector<8x512xf32>
    %75 = vector.extract_strided_slice %74 {offsets = [0, 0], sizes = [8, 128], strides = [1, 1]} : vector<8x512xf32> to vector<8x128xf32>
    %76 = arith.negf %75 : vector<8x128xf32>
    %77 = math.exp %76 : vector<8x128xf32>
    %cst_22 = arith.constant 1.000000e+00 : f32
    %78 = vector.broadcast %cst_22 : f32 to vector<8x128xf32>
    %79 = arith.addf %78, %77 : vector<8x128xf32>
    %80 = arith.divf %78, %79 : vector<8x128xf32>
    %81 = vector.extract_strided_slice %74 {offsets = [0, 128], sizes = [8, 128], strides = [1, 1]} : vector<8x512xf32> to vector<8x128xf32>
    %82 = arith.negf %81 : vector<8x128xf32>
    %83 = math.exp %82 : vector<8x128xf32>
    %cst_23 = arith.constant 1.000000e+00 : f32
    %84 = vector.broadcast %cst_23 : f32 to vector<8x128xf32>
    %85 = arith.addf %84, %83 : vector<8x128xf32>
    %86 = arith.divf %84, %85 : vector<8x128xf32>
    %87 = vector.extract_strided_slice %74 {offsets = [0, 256], sizes = [8, 128], strides = [1, 1]} : vector<8x512xf32> to vector<8x128xf32>
    %88 = math.tanh %87 : vector<8x128xf32>
    %89 = vector.extract_strided_slice %74 {offsets = [0, 384], sizes = [8, 128], strides = [1, 1]} : vector<8x512xf32> to vector<8x128xf32>
    %90 = arith.negf %89 : vector<8x128xf32>
    %91 = math.exp %90 : vector<8x128xf32>
    %cst_24 = arith.constant 1.000000e+00 : f32
    %92 = vector.broadcast %cst_24 : f32 to vector<8x128xf32>
    %93 = arith.addf %92, %91 : vector<8x128xf32>
    %94 = arith.divf %92, %93 : vector<8x128xf32>
    %95 = arith.mulf %86, %68 : vector<8x128xf32>
    %96 = arith.mulf %80, %88 : vector<8x128xf32>
    %97 = arith.addf %95, %96 : vector<8x128xf32>
    %98 = math.tanh %97 : vector<8x128xf32>
    %99 = arith.mulf %94, %98 : vector<8x128xf32>
    %100 = vector.extract_strided_slice %9 {offsets = [24, 0], sizes = [8, 512], strides = [1, 1]} : vector<32x512xf32> to vector<8x512xf32>
    %101 = arith.truncf %99 : vector<8x128xf32> to vector<8x128xbf16>
    %cst_25 = arith.constant dense<0.000000e+00> : vector<8x512xf32>
    %102 = tpu.matmul %101, %10, %cst_25 {dimension_numbers = #tpu.dot_dimension_numbers<[1], [0], [0], [1], [0, 0, 1, 1], [], []>} : vector<8x128xbf16>, vector<128x512xbf16>, vector<8x512xf32> -> vector<8x512xf32>
    %103 = arith.addf %100, %102 : vector<8x512xf32>
    %104 = vector.extract_strided_slice %103 {offsets = [0, 0], sizes = [8, 128], strides = [1, 1]} : vector<8x512xf32> to vector<8x128xf32>
    %105 = arith.negf %104 : vector<8x128xf32>
    %106 = math.exp %105 : vector<8x128xf32>
    %cst_26 = arith.constant 1.000000e+00 : f32
    %107 = vector.broadcast %cst_26 : f32 to vector<8x128xf32>
    %108 = arith.addf %107, %106 : vector<8x128xf32>
    %109 = arith.divf %107, %108 : vector<8x128xf32>
    %110 = vector.extract_strided_slice %103 {offsets = [0, 128], sizes = [8, 128], strides = [1, 1]} : vector<8x512xf32> to vector<8x128xf32>
    %111 = arith.negf %110 : vector<8x128xf32>
    %112 = math.exp %111 : vector<8x128xf32>
    %cst_27 = arith.constant 1.000000e+00 : f32
    %113 = vector.broadcast %cst_27 : f32 to vector<8x128xf32>
    %114 = arith.addf %113, %112 : vector<8x128xf32>
    %115 = arith.divf %113, %114 : vector<8x128xf32>
    %116 = vector.extract_strided_slice %103 {offsets = [0, 256], sizes = [8, 128], strides = [1, 1]} : vector<8x512xf32> to vector<8x128xf32>
    %117 = math.tanh %116 : vector<8x128xf32>
    %118 = vector.extract_strided_slice %103 {offsets = [0, 384], sizes = [8, 128], strides = [1, 1]} : vector<8x512xf32> to vector<8x128xf32>
    %119 = arith.negf %118 : vector<8x128xf32>
    %120 = math.exp %119 : vector<8x128xf32>
    %cst_28 = arith.constant 1.000000e+00 : f32
    %121 = vector.broadcast %cst_28 : f32 to vector<8x128xf32>
    %122 = arith.addf %121, %120 : vector<8x128xf32>
    %123 = arith.divf %121, %122 : vector<8x128xf32>
    %124 = arith.mulf %115, %97 : vector<8x128xf32>
    %125 = arith.mulf %109, %117 : vector<8x128xf32>
    %126 = arith.addf %124, %125 : vector<8x128xf32>
    %127 = math.tanh %126 : vector<8x128xf32>
    %128 = arith.mulf %123, %127 : vector<8x128xf32>
    %c0_29 = arith.constant 0 : index
    %c0_30 = arith.constant 0 : index
    %129 = vector.load %arg8[%c0_29, %c0_30] : memref<8x128xf32, #tpu.memory_space<vmem>>, vector<8x128xf32>
    tpu.vector_store %arg8[%c0_29, %c0_30], %128 {strides = array<i32>} : memref<8x128xf32, #tpu.memory_space<vmem>>, vector<8x128xf32>,
    %c0_31 = arith.constant 0 : index
    %c0_32 = arith.constant 0 : index
    %130 = vector.load %arg9[%c0_31, %c0_32] : memref<8x128xf32, #tpu.memory_space<vmem>>, vector<8x128xf32>
    tpu.vector_store %arg9[%c0_31, %c0_32], %126 {strides = array<i32>} : memref<8x128xf32, #tpu.memory_space<vmem>>, vector<8x128xf32>,
    %c1_i32 = arith.constant 1 : i32
    %131 = arith.cmpi eq, %arg0, %c1_i32 : i32
    %132 = arith.extui %131 : i1 to i32
    %c0_i32_33 = arith.constant 0 : i32
    %133 = arith.cmpi ne, %132, %c0_i32_33 : i32
    scf.if %133 {
      %134 = arith.truncf %128 : vector<8x128xf32> to vector<8x128xbf16>
      %c0_34 = arith.constant 0 : index
      %c0_35 = arith.constant 0 : index
      %135 = vector.load %arg5[%c0_34, %c0_35] : memref<128x128xbf16, #tpu.memory_space<vmem>>, vector<128x128xbf16>
      %cst_36 = arith.constant dense<0.000000e+00> : vector<8x128xf32>
      %136 = tpu.matmul %134, %135, %cst_36 {dimension_numbers = #tpu.dot_dimension_numbers<[1], [0], [0], [1], [0, 0, 1, 1], [], []>} : vector<8x128xbf16>, vector<128x128xbf16>, vector<8x128xf32> -> vector<8x128xf32>
      %c0_37 = arith.constant 0 : index
      %c0_38 = arith.constant 0 : index
      %137 = vector.load %arg6[%c0_37, %c0_38] : memref<1x128xf32, #tpu.memory_space<vmem>>, vector<1x128xf32>
      %138 = vector.broadcast %137 : vector<1x128xf32> to vector<8x128xf32>
      %139 = arith.addf %136, %138 : vector<8x128xf32>
      %cst_39 = arith.constant dense<0xFF800000> : vector<8xf32>
      %140 = vector.multi_reduction <maximumf>, %139, %cst_39 [1] : vector<8x128xf32> to vector<8xf32>
      %141 = vector.shape_cast %140 : vector<8xf32> to vector<8x1xf32>
      %142 = vector.broadcast %141 : vector<8x1xf32> to vector<8x128xf32>
      %143 = arith.subf %139, %142 : vector<8x128xf32>
      %144 = math.exp %143 : vector<8x128xf32>
      %cst_40 = arith.constant dense<0.000000e+00> : vector<8xf32>
      %145 = vector.multi_reduction <add>, %144, %cst_40 [1] : vector<8x128xf32> to vector<8xf32>
      %146 = vector.shape_cast %145 : vector<8xf32> to vector<8x1xf32>
      %147 = math.log %146 : vector<8x1xf32>
      %148 = arith.addf %141, %147 : vector<8x1xf32>
      %149 = vector.broadcast %148 : vector<8x1xf32> to vector<8x128xf32>
      %150 = arith.subf %139, %149 : vector<8x128xf32>
      %c0_41 = arith.constant 0 : index
      %c0_42 = arith.constant 0 : index
      %151 = vector.load %arg7[%c0_41, %c0_42] : memref<8x128xf32, #tpu.memory_space<vmem>>, vector<8x128xf32>
      tpu.vector_store %arg7[%c0_41, %c0_42], %150 {strides = array<i32>} : memref<8x128xf32, #tpu.memory_space<vmem>>, vector<8x128xf32>,
    } else {
    }
    return
  }
  func.func @transform_0(%arg0: i32) -> (i32, i32, i32) {
    %c0_i32 = arith.constant 0 : i32
    %c0_i32_0 = arith.constant 0 : i32
    %c0_i32_1 = arith.constant 0 : i32
    return %arg0, %c0_i32, %c0_i32_0 : i32, i32, i32
  }
  func.func @transform_1(%arg0: i32) -> (i32, i32) {
    %c0_i32 = arith.constant 0 : i32
    %c0_i32_0 = arith.constant 0 : i32
    %c0_i32_1 = arith.constant 0 : i32
    return %c0_i32, %c0_i32_0 : i32, i32
  }
  func.func @transform_2(%arg0: i32) -> (i32, i32) {
    %c0_i32 = arith.constant 0 : i32
    %c0_i32_0 = arith.constant 0 : i32
    %c0_i32_1 = arith.constant 0 : i32
    return %c0_i32, %c0_i32_0 : i32, i32
  }
  func.func @transform_3(%arg0: i32) -> (i32, i32) {
    %c0_i32 = arith.constant 0 : i32
    %c0_i32_0 = arith.constant 0 : i32
    %c0_i32_1 = arith.constant 0 : i32
    return %c0_i32, %c0_i32_0 : i32, i32
  }
  func.func @transform_4(%arg0: i32) -> (i32, i32) {
    %c0_i32 = arith.constant 0 : i32
    %c0_i32_0 = arith.constant 0 : i32
    %c0_i32_1 = arith.constant 0 : i32
    return %c0_i32, %c0_i32_0 : i32, i32
  }
  func.func @transform_5(%arg0: i32) -> (i32, i32) {
    %c0_i32 = arith.constant 0 : i32
    %c0_i32_0 = arith.constant 0 : i32
    %c0_i32_1 = arith.constant 0 : i32
    return %c0_i32, %c0_i32_0 : i32, i32
  }
  func.func @transform_6(%arg0: i32) -> (i32, i32) {
    %c0_i32 = arith.constant 0 : i32
    %c0_i32_0 = arith.constant 0 : i32
    %c0_i32_1 = arith.constant 0 : i32
    return %c0_i32, %c0_i32_0 : i32, i32
  }
}

</mosaic_0001>

<llo_original>
// kernel: tpu_custom_call.1
$region0: #{tpu_custom_call.1}
  #allocation0 [shape = 'u32[]', space=smem, size = 0x4, offset = 0x4, fixed_abs, tag = 'smem constant byte address 0x4 - core index']
  #allocation1 [shape = 'u32[144,128]{1,0:T(1,128)}', space=vmem, size = 0x12000, scoped, tag = 'internal scratch']
  #allocation2 [shape = 'f32[8,128]{1,0:T(8,128)}', space=vmem, size = 0x1000, scoped, tag = 'scratch operand']
  #allocation3 [shape = 'f32[8,128]{1,0:T(8,128)}', space=vmem, size = 0x1000, scoped, tag = 'scratch operand']
  %s0 = inlined_call_operand.hbm [shape: bf16[2,32,32], index: 0, kind: input, shape index: {}]
  %s1 = inlined_call_operand.hbm [shape: bf16[32,512], index: 1, kind: input, shape index: {}]
  %s2 = inlined_call_operand.hbm [shape: bf16[128,512], index: 2, kind: input, shape index: {}]
  %s3 = inlined_call_operand.vmem [shape: f32[1,512], index: 3, kind: input, shape index: {}]
  %s4 = inlined_call_operand.hbm [shape: bf16[128,128], index: 4, kind: input, shape index: {}]
  %s5 = inlined_call_operand.vmem [shape: f32[1,128], index: 5, kind: input, shape index: {}]
  %s6 = inlined_call_operand.hbm [shape: f32[8,128], index: 6, kind: output, shape index: {}]
  %s7 = sld [smem:[#allocation0]]
  $region81: #{tpu_custom_call.1} parent=0
    _
  %s9 = ssub.s32 1, %s7
  %s10 = scalar_select 0, %s9, %s7
  $region1: #{tpu_custom_call.1} parent=0
    #allocation4 [shape = 'u8[16384]{0}', space=vmem, size = 0x4000, scoped, tag = 'input window, operand 0']
    #allocation5 [shape = 's32[2]{0}', space=sflag, size = 0x8, scoped, tag = 'scoped memory for tpu_custom_call.1']
    #allocation6 [shape = 's32[2]{0}', space=sflag, size = 0x8, scoped, tag = 'scoped memory for tpu_custom_call.1']
    #allocation7 [shape = 'u8[32768]{0}', space=vmem, size = 0x8000, scoped, tag = 'input window, operand 1, single buffered']
    #allocation8 [shape = 's32[1]{0}', space=sflag, size = 0x4, scoped, tag = 'scoped memory for tpu_custom_call.1']
    #allocation9 [shape = 'u8[131072]{0}', space=vmem, size = 0x20000, scoped, tag = 'input window, operand 2, single buffered']
    #allocation10 [shape = 'u8[32768]{0}', space=vmem, size = 0x8000, scoped, tag = 'input window, operand 4, single buffered']
    #allocation11 [shape = 's32[1]{0}', space=sflag, size = 0x4, scoped, tag = 'scoped memory for tpu_custom_call.1']
    #allocation12 [shape = 'u8[4096]{0}', space=vmem, size = 0x1000, scoped, tag = 'output window, operand 0, single buffered']
    %11 = vsyncpa [#allocation5], 0
    %s12 = scalar_lea.sflag [#allocation5], 1
    %13 = vsyncpa %s12, 0
    %14 = vsyncpa [#allocation8], 0
    %15 = vsyncpa [#allocation11], 0
    %16 = vsyncpa [#allocation6], 0
    loop: start=0, step=1, limit=4
    $region2: #{tpu_custom_call.1} parent=1 // loop_pre_header
      _
    $region3: #{tpu_custom_call.1} parent=1 // loop_header
      %s18 = sphi 0, %s22
      %p19 = scmp.ge.s32.totalorder %s18, 4
      %s28 = sphi 0, %s30
      %s31 = sphi 0, %s28
      %s32 = sphi 0, %s31
      %s48 = sphi 0, %s32
      %s52 = sphi 0, %s52
      %s54 = sphi 0, %s52
      %s55 = sphi 0, %s54
      %s69 = sphi 0, %s55
      %s73 = sphi 0, %s73
      %s75 = sphi 0, %s73
      %s76 = sphi 0, %s75
      %s90 = sphi 0, %s76
      %s94 = sphi 0, %s94
      %s96 = sphi 0, %s94
      %s97 = sphi 0, %s96
      %s111 = sphi 0, %s97
      %s115 = sphi 0, %s115
      %s117 = sphi 0, %s115
      %s118 = sphi 0, %s117
      %s132 = sphi 0, %s118
      %s136 = sphi 0, %s136
      %s138 = sphi 0, %s136
      %s139 = sphi 0, %s138
      %s153 = sphi 0, %s139
      %s157 = sphi 0, %s157
      %s159 = sphi 0, %s157
      %s160 = sphi 0, %s159
      %s174 = sphi 0, %s160
    $region4: #{tpu_custom_call.1} parent=1 // loop_header_branch
      %21 = sbr.rel (%p19) target = $region8
    $region5: #{tpu_custom_call.1} parent=1 // loop_body
      %s23 = ssub.s32 %s18, 1
      %s24 = ssub.s32 %s18, 2
      %s25 = sadd.s32 %s18, 1
      %s26 = ssub.s32 %s18, %s25
      %p27 = scmp.eq.s32.totalorder %s26, 0
      %s29 = sadd.s32 %s28, 1
      %s30 = scalar_select %p27, %s28, %s29
      %p33 = pneg %p27
      %p34 = scmp.eq.s32.totalorder %s18, 1
      %p35 = por %p33, %p34
      %p36 = scmp.ne.s32.totalorder %s28, %s31
      %p37 = scmp.eq.s32.totalorder %s18, 0
      %p38 = por %p36, %p37
      %p39 = scmp.ne.s32.totalorder %s28, %s31
      %p40 = scmp.eq.s32.totalorder %s23, 1
      %p41 = por %p39, %p40
      %p42 = scmp.ne.s32.totalorder %s31, %s32
      %p43 = scmp.eq.s32.totalorder %s23, 0
      %p44 = por %p42, %p43
      %p45 = scmp.ne.s32.totalorder %s31, %s32
      %p46 = scmp.eq.s32.totalorder %s24, 1
      %p47 = por %p45, %p46
      %p49 = scmp.ne.s32.totalorder %s32, %s48
      %p50 = scmp.eq.s32.totalorder %s24, 0
      %p51 = por %p49, %p50
      %s53 = sadd.s32 %s52, 1
      %p56 = scmp.eq.s32.totalorder %s18, 1
      %p57 = scmp.ne.s32.totalorder %s52, %s54
      %p58 = scmp.eq.s32.totalorder %s18, 0
      %p59 = por %p57, %p58
      %p60 = scmp.ne.s32.totalorder %s52, %s54
      %p61 = scmp.eq.s32.totalorder %s23, 1
      %p62 = por %p60, %p61
      %p63 = scmp.ne.s32.totalorder %s54, %s55
      %p64 = scmp.eq.s32.totalorder %s23, 0
      %p65 = por %p63, %p64
      %p66 = scmp.ne.s32.totalorder %s54, %s55
      %p67 = scmp.eq.s32.totalorder %s24, 1
      %p68 = por %p66, %p67
      %p70 = scmp.ne.s32.totalorder %s55, %s69
      %p71 = scmp.eq.s32.totalorder %s24, 0
      %p72 = por %p70, %p71
      %s74 = sadd.s32 %s73, 1
      %p77 = scmp.eq.s32.totalorder %s18, 1
      %p78 = scmp.ne.s32.totalorder %s73, %s75
      %p79 = scmp.eq.s32.totalorder %s18, 0
      %p80 = por %p78, %p79
      %p81 = scmp.ne.s32.totalorder %s73, %s75
      %p82 = scmp.eq.s32.totalorder %s23, 1
      %p83 = por %p81, %p82
      %p84 = scmp.ne.s32.totalorder %s75, %s76
      %p85 = scmp.eq.s32.totalorder %s23, 0
      %p86 = por %p84, %p85
      %p87 = scmp.ne.s32.totalorder %s75, %s76
      %p88 = scmp.eq.s32.totalorder %s24, 1
      %p89 = por %p87, %p88
      %p91 = scmp.ne.s32.totalorder %s76, %s90
      %p92 = scmp.eq.s32.totalorder %s24, 0
      %p93 = por %p91, %p92
      %s95 = sadd.s32 %s94, 1
      %p98 = scmp.eq.s32.totalorder %s18, 1
      %p99 = scmp.ne.s32.totalorder %s94, %s96
      %p100 = scmp.eq.s32.totalorder %s18, 0
      %p101 = por %p99, %p100
      %p102 = scmp.ne.s32.totalorder %s94, %s96
      %p103 = scmp.eq.s32.totalorder %s23, 1
      %p104 = por %p102, %p103
      %p105 = scmp.ne.s32.totalorder %s96, %s97
      %p106 = scmp.eq.s32.totalorder %s23, 0
      %p107 = por %p105, %p106
      %p108 = scmp.ne.s32.totalorder %s96, %s97
      %p109 = scmp.eq.s32.totalorder %s24, 1
      %p110 = por %p108, %p109
      %p112 = scmp.ne.s32.totalorder %s97, %s111
      %p113 = scmp.eq.s32.totalorder %s24, 0
      %p114 = por %p112, %p113
      %s116 = sadd.s32 %s115, 1
      %p119 = scmp.eq.s32.totalorder %s18, 1
      %p120 = scmp.ne.s32.totalorder %s115, %s117
      %p121 = scmp.eq.s32.totalorder %s18, 0
      %p122 = por %p120, %p121
      %p123 = scmp.ne.s32.totalorder %s115, %s117
      %p124 = scmp.eq.s32.totalorder %s23, 1
      %p125 = por %p123, %p124
      %p126 = scmp.ne.s32.totalorder %s117, %s118
      %p127 = scmp.eq.s32.totalorder %s23, 0
      %p128 = por %p126, %p127
      %p129 = scmp.ne.s32.totalorder %s117, %s118
      %p130 = scmp.eq.s32.totalorder %s24, 1
      %p131 = por %p129, %p130
      %p133 = scmp.ne.s32.totalorder %s118, %s132
      %p134 = scmp.eq.s32.totalorder %s24, 0
      %p135 = por %p133, %p134
      %s137 = sadd.s32 %s136, 1
      %p140 = scmp.eq.s32.totalorder %s18, 1
      %p141 = scmp.ne.s32.totalorder %s136, %s138
      %p142 = scmp.eq.s32.totalorder %s18, 0
      %p143 = por %p141, %p142
      %p144 = scmp.ne.s32.totalorder %s136, %s138
      %p145 = scmp.eq.s32.totalorder %s23, 1
      %p146 = por %p144, %p145
      %p147 = scmp.ne.s32.totalorder %s138, %s139
      %p148 = scmp.eq.s32.totalorder %s23, 0
      %p149 = por %p147, %p148
      %p150 = scmp.ne.s32.totalorder %s138, %s139
      %p151 = scmp.eq.s32.totalorder %s24, 1
      %p152 = por %p150, %p151
      %p154 = scmp.ne.s32.totalorder %s139, %s153
      %p155 = scmp.eq.s32.totalorder %s24, 0
      %p156 = por %p154, %p155
      %s158 = sadd.s32 %s157, 1
      %p161 = scmp.eq.s32.totalorder %s18, 1
      %p162 = scmp.ne.s32.totalorder %s157, %s159
      %p163 = scmp.eq.s32.totalorder %s18, 0
      %p164 = por %p162, %p163
      %p165 = scmp.ne.s32.totalorder %s157, %s159
      %p166 = scmp.eq.s32.totalorder %s23, 1
      %p167 = por %p165, %p166
      %p168 = scmp.ne.s32.totalorder %s159, %s160
      %p169 = scmp.eq.s32.totalorder %s23, 0
      %p170 = por %p168, %p169
      %p171 = scmp.ne.s32.totalorder %s159, %s160
      %p172 = scmp.eq.s32.totalorder %s24, 1
      %p173 = por %p171, %p172
      %p175 = scmp.ne.s32.totalorder %s160, %s174
      %p176 = scmp.eq.s32.totalorder %s24, 0
      %p177 = por %p175, %p176
      %p178 = scmp.le.s32.totalorder 1, %s18
      %p179 = scmp.lt.s32.totalorder %s18, 3
      %p180 = pnand %p178, %p179
      %p181 = pneg %p180
      // Predicated region
      $region9: #{tpu_custom_call.1} parent=5 // pred_check
        _
      $region10: #{tpu_custom_call.1} parent=5 // pred_check_branch
        %183 = sbr.rel (%p180) target = $region12
      $region11: #{tpu_custom_call.1} parent=5 // pred_region
        %s184 = ssub.s32 %s18, 1
        // Predicated region
        $region13: #{tpu_custom_call.1} parent=11 // pred_check
          %p185 = pneg %p65
        $region14: #{tpu_custom_call.1} parent=11 // pred_check_branch
          %187 = sbr.rel (%p185) target = $region16
        $region15: #{tpu_custom_call.1} parent=11 // pred_region
          %s189 = ssub.s32 1024, 1024
          %190 = vsyncadd [#allocation8], %s189
          %s191 = sshll.u32 [#allocation7], 4
          %s192 = int_to_ptr.vmem [resolvable:$true] %s191
          %197 = dma.hbm_to_vmem [thread:$0]  %s1, 1024, %s192, [#allocation8], 256, 256, 16
        $region16: #{tpu_custom_call.1} parent=11 // pred_fallthru
          _
        // Predicated region
        $region17: #{tpu_custom_call.1} parent=11 // pred_check
          %p198 = pneg %p86
        $region18: #{tpu_custom_call.1} parent=11 // pred_check_branch
          %200 = sbr.rel (%p198) target = $region20
        $region19: #{tpu_custom_call.1} parent=11 // pred_region
          %s202 = ssub.s32 4096, 4096
          %203 = vsyncadd [#allocation8], %s202
          %s204 = sshll.u32 [#allocation9], 4
          %s205 = int_to_ptr.vmem [resolvable:$true] %s204
          %210 = dma.hbm_to_vmem [thread:$0]  %s2, 4096, %s205, [#allocation8], 256, 256, 16
        $region20: #{tpu_custom_call.1} parent=11 // pred_fallthru
          _
        // Predicated region
        $region21: #{tpu_custom_call.1} parent=11 // pred_check
          %p211 = pneg %p107
        $region22: #{tpu_custom_call.1} parent=11 // pred_check_branch
          %213 = sbr.rel (%p211) target = $region24
        $region23: #{tpu_custom_call.1} parent=11 // pred_region
          _
        $region24: #{tpu_custom_call.1} parent=11 // pred_fallthru
          _
        // Predicated region
        $region25: #{tpu_custom_call.1} parent=11 // pred_check
          %p214 = pneg %p128
        $region26: #{tpu_custom_call.1} parent=11 // pred_check_branch
          %216 = sbr.rel (%p214) target = $region28
        $region27: #{tpu_custom_call.1} parent=11 // pred_region
          %s218 = ssub.s32 1024, 1024
          %219 = vsyncadd [#allocation11], %s218
          %s220 = sshll.u32 [#allocation10], 4
          %s221 = int_to_ptr.vmem [resolvable:$true] %s220
          %226 = dma.hbm_to_vmem [thread:$0]  %s4, 1024, %s221, [#allocation11], 64, 64, 4
        $region28: #{tpu_custom_call.1} parent=11 // pred_fallthru
          _
        // Predicated region
        $region29: #{tpu_custom_call.1} parent=11 // pred_check
          %p227 = pneg %p149
        $region30: #{tpu_custom_call.1} parent=11 // pred_check_branch
          %229 = sbr.rel (%p227) target = $region32
        $region31: #{tpu_custom_call.1} parent=11 // pred_region
          _
        $region32: #{tpu_custom_call.1} parent=11 // pred_fallthru
          _
      $region12: #{tpu_custom_call.1} parent=5 // pred_fallthru
        _
      %p230 = scmp.lt.s32.totalorder %s18, 2
      // Predicated region
      $region33: #{tpu_custom_call.1} parent=5 // pred_check
        %p231 = pneg %p230
      $region34: #{tpu_custom_call.1} parent=5 // pred_check_branch
        %233 = sbr.rel (%p231) target = $region36
      $region35: #{tpu_custom_call.1} parent=5 // pred_region
        // Predicated region
        $region37: #{tpu_custom_call.1} parent=35 // pred_check
          %p234 = pneg %p38
        $region38: #{tpu_custom_call.1} parent=35 // pred_check_branch
          %236 = sbr.rel (%p234) target = $region40
        $region39: #{tpu_custom_call.1} parent=35 // pred_region
          %s237 = sand.u32 %s28, 1
          %s238 = scalar_lea.sflag [#allocation5], %s237
          %s239 = sand.u32 %s28, 1
          %s240 = smul.addr %s239, 16
          %s241 = scalar_lea.vmem [#allocation4], %s240
          %s243 = ssub.s32 256, 256
          %244 = vsyncadd %s238, %s243
          %s245 = smul.addr %s18, 4
          %s246 = smul.addr %s245, 64
          %s247 = scalar_lea.hbm %s0, %s246
          %s248 = sshll.u32 %s241, 4
          %s249 = int_to_ptr.vmem [resolvable:$true] %s248
          %254 = dma.hbm_to_vmem [thread:$0]  %s247, 256, %s249, %s238, 64, 64, 4
        $region40: #{tpu_custom_call.1} parent=35 // pred_fallthru
          _
      $region36: #{tpu_custom_call.1} parent=5 // pred_fallthru
        _
      %p255 = scmp.le.s32.totalorder 1, %s18
      %p256 = scmp.lt.s32.totalorder %s18, 3
      %p257 = pnand %p255, %p256
      %p258 = pneg %p257
      // Predicated region
      $region41: #{tpu_custom_call.1} parent=5 // pred_check
        _
      $region42: #{tpu_custom_call.1} parent=5 // pred_check_branch
        %260 = sbr.rel (%p257) target = $region44
      $region43: #{tpu_custom_call.1} parent=5 // pred_region
        %s261 = ssub.s32 %s18, 1
        %s262 = sand.u32 %s31, 1
        %s263 = scalar_lea.sflag [#allocation5], %s262
        %s264 = sand.u32 %s31, 1
        %s265 = smul.addr %s264, 16
        %s266 = scalar_lea.vmem [#allocation4], %s265
        // Predicated region
        $region45: #{tpu_custom_call.1} parent=43 // pred_check
          %p267 = pneg %p44
        $region46: #{tpu_custom_call.1} parent=43 // pred_check_branch
          %269 = sbr.rel (%p267) target = $region48
        $region47: #{tpu_custom_call.1} parent=43 // pred_region
          %270 = dma.done %s263, 256
        $region48: #{tpu_custom_call.1} parent=43 // pred_fallthru
          _
        // Predicated region
        $region49: #{tpu_custom_call.1} parent=43 // pred_check
          %p271 = pneg %p65
        $region50: #{tpu_custom_call.1} parent=43 // pred_check_branch
          %273 = sbr.rel (%p271) target = $region52
        $region51: #{tpu_custom_call.1} parent=43 // pred_region
          %274 = dma.done [#allocation8], 1024
        $region52: #{tpu_custom_call.1} parent=43 // pred_fallthru
          _
        // Predicated region
        $region53: #{tpu_custom_call.1} parent=43 // pred_check
          %p275 = pneg %p86
        $region54: #{tpu_custom_call.1} parent=43 // pred_check_branch
          %277 = sbr.rel (%p275) target = $region56
        $region55: #{tpu_custom_call.1} parent=43 // pred_region
          %278 = dma.done [#allocation8], 4096
        $region56: #{tpu_custom_call.1} parent=43 // pred_fallthru
          _
        // Predicated region
        $region57: #{tpu_custom_call.1} parent=43 // pred_check
          %p279 = pneg %p128
        $region58: #{tpu_custom_call.1} parent=43 // pred_check_branch
          %281 = sbr.rel (%p279) target = $region60
        $region59: #{tpu_custom_call.1} parent=43 // pred_region
          %282 = dma.done [#allocation11], 1024
        $region60: #{tpu_custom_call.1} parent=43 // pred_fallthru
          _
        %s283 = sand.u32 %s31, 1
        %s284 = scalar_lea.sflag [#allocation5], %s283
        %s285 = sand.u32 %s31, 1
        %s286 = smul.addr %s285, 16
        %s287 = scalar_lea.vmem [#allocation4], %s286
        %p288 = pneg %p44
        %p289 = pneg %p41
        %p290 = pneg %p65
        %p291 = pneg %p62
        %p292 = pneg %p86
        %p293 = pneg %p83
        %p294 = pneg %p107
        %p295 = pneg %p104
        %p296 = pneg %p128
        %p297 = pneg %p125
        %p298 = pneg %p149
        %p299 = pneg %p146
        %p300 = pneg %p170
        %p301 = pneg %p167
        %p303 = scmp.eq.s32.totalorder %s23, 0
        // Predicated region
        $region61: #{tpu_custom_call.1} parent=43 // pred_check
          %p304 = pneg %p303
        $region62: #{tpu_custom_call.1} parent=43 // pred_check_branch
          %306 = sbr.rel (%p304) target = $region64
        $region63: #{tpu_custom_call.1} parent=43 // pred_region
          %307 = vst [vmem:[#allocation2] sm:$0xff] 0.0
          %308 = vst [vmem:[#allocation3] sm:$0xff] 0.0
        $region64: #{tpu_custom_call.1} parent=43 // pred_fallthru
          _
        %v309 = vld [vmem:[%s266] sm:$0xf]
        %v310 = vld [vmem:[%s266 + $0x4] sm:$0xf]
        %v311 = vld [vmem:[%s266 + $0x8] sm:$0xf]
        %v312 = vld [vmem:[%s266 + $0xc] sm:$0xf]
        %v313 = vld [vmem:[#allocation7] sm:$0xff]
        %v314 = vld [vmem:[#allocation7 + $0x8] sm:$0xff]
        %v315 = vld [vmem:[#allocation7 + $0x10] sm:$0xff]
        %v316 = vld [vmem:[#allocation7 + $0x18] sm:$0xff]
        %v317 = vld [vmem:[#allocation7 + $0x20] sm:$0xff]
        %v318 = vld [vmem:[#allocation7 + $0x28] sm:$0xff]
        %v319 = vld [vmem:[#allocation7 + $0x30] sm:$0xff]
        %v320 = vld [vmem:[#allocation7 + $0x38] sm:$0xff]
        %v321 = vld [vmem:[%s3] sm:$0xf]
        %v323 = vlaneseq
        %v324 = vshrl.u32 %v323, 7
        %v325 = vsub.s32 0, %v324
        %v326 = vrot.slane %v321, %v325
        %v327 = vlaneseq
        %v328 = vshrl.u32 %v327, 7
        %v329 = vsub.s32 1, %v328
        %v330 = vrot.slane %v321, %v329
        %v331 = vlaneseq
        %v332 = vshrl.u32 %v331, 7
        %v333 = vsub.s32 2, %v332
        %v334 = vrot.slane %v321, %v333
        %v335 = vlaneseq
        %v336 = vshrl.u32 %v335, 7
        %v337 = vsub.s32 3, %v336
        %v338 = vrot.slane %v321, %v337
        %v347 = vunpack.c.l.b16 %v309
        %v348 = vunpack.c.l.b16 %v310
        %v349 = vunpack.c.l.b16 %v311
        %v350 = vunpack.c.l.b16 %v312
        %v351 = vpack.c.b16 %v348, %v347
        %v352 = vpack.c.b16 %v350, %v349
        %v361 = vunpack.c.l.b16 %v313
        %v362 = vunpack.c.h.b16 %v313
        %v363 = vunpack.c.l.b16 %v314
        %v364 = vunpack.c.h.b16 %v314
        %v365 = vunpack.c.l.b16 %v315
        %v366 = vunpack.c.h.b16 %v315
        %v367 = vunpack.c.l.b16 %v316
        %v368 = vunpack.c.h.b16 %v316
        %v369 = vunpack.c.l.b16 %v317
        %v370 = vunpack.c.h.b16 %v317
        %v371 = vunpack.c.l.b16 %v318
        %v372 = vunpack.c.h.b16 %v318
        %v373 = vunpack.c.l.b16 %v319
        %v374 = vunpack.c.h.b16 %v319
        %v375 = vunpack.c.l.b16 %v320
        %v376 = vunpack.c.h.b16 %v320
        %v377 = vpack.c.b16 %v365, %v361
        %v378 = vpack.c.b16 %v366, %v362
        %v379 = vpack.c.b16 %v367, %v363
        %v380 = vpack.c.b16 %v368, %v364
        %v381 = vpack.c.b16 %v373, %v369
        %v382 = vpack.c.b16 %v374, %v370
        %v383 = vpack.c.b16 %v375, %v371
        %v384 = vpack.c.b16 %v376, %v372
        %vm393 = vcmask 261120
        %v395 = vsel %vm393, %v351, 0
        %v398 = vsel %vm393, %v352, 0
        %400 = vmatprep.subr.bf16.mxu0 0
        %401 = vmatpush1.bf16.msra.mxu0 0
        %402 = vmatprep.subr.bf16.mxu0 0
        %403 = vmatpush1.bf16.msra.mxu0 0
        %404 = vmatprep.subr.bf16.mxu0 0
        %405 = vmatpush1.bf16.msra.mxu0 0
        %406 = vmatprep.subr.bf16.mxu0 0
        %407 = vmatpush1.bf16.msra.mxu0 0
        %408 = vmatprep.subr.bf16.mxu0 0
        %409 = vmatpush1.bf16.msra.mxu0 0
        %410 = vmatprep.subr.bf16.mxu0 0
        %411 = vmatpush1.bf16.msra.mxu0 0
        %412 = vmatprep.subr.bf16.mxu0 %v382
        %413 = vmatpush1.bf16.msra.mxu0 %v381
        %414 = vmatprep.subr.bf16.mxu0 %v378
        %415 = vmatpush1.bf16.msra.mxu0 %v377
        %416 = vmatprep.subr.bf16.mxu0 0
        %417 = vmatpush2.bf16.msra.mxu0 0
        %418 = vmatprep.subr.bf16.mxu0 0
        %419 = vmatpush2.bf16.msra.mxu0 0
        %420 = vmatprep.subr.bf16.mxu0 0
        %421 = vmatpush2.bf16.msra.mxu0 0
        %422 = vmatprep.subr.bf16.mxu0 0
        %423 = vmatpush2.bf16.msra.mxu0 0
        %424 = vmatprep.subr.bf16.mxu0 0
        %425 = vmatpush2.bf16.msra.mxu0 0
        %426 = vmatprep.subr.bf16.mxu0 0
        %427 = vmatpush2.bf16.msra.mxu0 0
        %428 = vmatprep.subr.bf16.mxu0 0
        %429 = vmatpush2.bf16.msra.mxu0 0
        %430 = vmatprep.subr.bf16.mxu0 0
        %431 = vmatpush2.bf16.msra.mxu0 0
        %432 = vmatprep.mubr.bf16.mxu0 0
        %433 = vmatmul.mubr.bf16.gmra.mxu0 %v395
        %v434 = vpop.f32.mrf.mxu0
        %v435 = vadd.f32 %v326, %v434
        %v436 = vpop.f32.mrf.mxu0
        %v437 = vadd.f32 %v330, %v436
        %v438 = vpop.f32.mrf.mxu0
        %v439 = vadd.f32 %v326, %v438
        %v440 = vpop.f32.mrf.mxu0
        %v441 = vadd.f32 %v330, %v440
        %442 = vmatprep.mubr.bf16.mxu0 0
        %443 = vmatmul.mubr.bf16.gmra.mxu0 %v398
        %v444 = vpop.f32.mrf.mxu0
        %v445 = vadd.f32 %v326, %v444
        %v446 = vpop.f32.mrf.mxu0
        %v447 = vadd.f32 %v330, %v446
        %v448 = vpop.f32.mrf.mxu0
        %v449 = vadd.f32 %v326, %v448
        %v450 = vpop.f32.mrf.mxu0
        %v451 = vadd.f32 %v330, %v450
        %452 = vdwg.mxu0
        %453 = vmatprep.subr.bf16.mxu0 0
        %454 = vmatpush1.bf16.msra.mxu0 0
        %455 = vmatprep.subr.bf16.mxu0 0
        %456 = vmatpush1.bf16.msra.mxu0 0
        %457 = vmatprep.subr.bf16.mxu0 0
        %458 = vmatpush1.bf16.msra.mxu0 0
        %459 = vmatprep.subr.bf16.mxu0 0
        %460 = vmatpush1.bf16.msra.mxu0 0
        %461 = vmatprep.subr.bf16.mxu0 0
        %462 = vmatpush1.bf16.msra.mxu0 0
        %463 = vmatprep.subr.bf16.mxu0 0
        %464 = vmatpush1.bf16.msra.mxu0 0
        %465 = vmatprep.subr.bf16.mxu0 %v384
        %466 = vmatpush1.bf16.msra.mxu0 %v383
        %467 = vmatprep.subr.bf16.mxu0 %v380
        %468 = vmatpush1.bf16.msra.mxu0 %v379
        %469 = vmatprep.subr.bf16.mxu0 0
        %470 = vmatpush2.bf16.msra.mxu0 0
        %471 = vmatprep.subr.bf16.mxu0 0
        %472 = vmatpush2.bf16.msra.mxu0 0
        %473 = vmatprep.subr.bf16.mxu0 0
        %474 = vmatpush2.bf16.msra.mxu0 0
        %475 = vmatprep.subr.bf16.mxu0 0
        %476 = vmatpush2.bf16.msra.mxu0 0
        %477 = vmatprep.subr.bf16.mxu0 0
        %478 = vmatpush2.bf16.msra.mxu0 0
        %479 = vmatprep.subr.bf16.mxu0 0
        %480 = vmatpush2.bf16.msra.mxu0 0
        %481 = vmatprep.subr.bf16.mxu0 0
        %482 = vmatpush2.bf16.msra.mxu0 0
        %483 = vmatprep.subr.bf16.mxu0 0
        %484 = vmatpush2.bf16.msra.mxu0 0
        %485 = vmatprep.mubr.bf16.mxu0 0
        %486 = vmatmul.mubr.bf16.gmra.mxu0 %v395
        %v487 = vpop.f32.mrf.mxu0
        %v488 = vadd.f32 %v334, %v487
        %v489 = vpop.f32.mrf.mxu0
        %v490 = vadd.f32 %v338, %v489
        %v491 = vpop.f32.mrf.mxu0
        %v492 = vadd.f32 %v334, %v491
        %v493 = vpop.f32.mrf.mxu0
        %v494 = vadd.f32 %v338, %v493
        %495 = vmatprep.mubr.bf16.mxu0 0
        %496 = vmatmul.mubr.bf16.gmra.mxu0 %v398
        %v497 = vpop.f32.mrf.mxu0
        %v498 = vadd.f32 %v334, %v497
        %v499 = vpop.f32.mrf.mxu0
        %v500 = vadd.f32 %v338, %v499
        %v501 = vpop.f32.mrf.mxu0
        %v502 = vadd.f32 %v334, %v501
        %v503 = vpop.f32.mrf.mxu0
        %v504 = vadd.f32 %v338, %v503
        %505 = vdwg.mxu0
        %v506 = vld [vmem:[#allocation9] sm:$0xff]
        %v507 = vld [vmem:[#allocation9 + $0x8] sm:$0xff]
        %v508 = vld [vmem:[#allocation9 + $0x10] sm:$0xff]
        %v509 = vld [vmem:[#allocation9 + $0x18] sm:$0xff]
        %v510 = vld [vmem:[#allocation9 + $0x20] sm:$0xff]
        %v511 = vld [vmem:[#allocation9 + $0x28] sm:$0xff]
        %v512 = vld [vmem:[#allocation9 + $0x30] sm:$0xff]
        %v513 = vld [vmem:[#allocation9 + $0x38] sm:$0xff]
        %v514 = vld [vmem:[#allocation9 + $0x40] sm:$0xff]
        %v515 = vld [vmem:[#allocation9 + $0x48] sm:$0xff]
        %v516 = vld [vmem:[#allocation9 + $0x50] sm:$0xff]
        %v517 = vld [vmem:[#allocation9 + $0x58] sm:$0xff]
        %v518 = vld [vmem:[#allocation9 + $0x60] sm:$0xff]
        %v519 = vld [vmem:[#allocation9 + $0x68] sm:$0xff]
        %v520 = vld [vmem:[#allocation9 + $0x70] sm:$0xff]
        %v521 = vld [vmem:[#allocation9 + $0x78] sm:$0xff]
        %v522 = vld [vmem:[#allocation9 + $0x80] sm:$0xff]
        %v523 = vld [vmem:[#allocation9 + $0x88] sm:$0xff]
        %v524 = vld [vmem:[#allocation9 + $0x90] sm:$0xff]
        %v525 = vld [vmem:[#allocation9 + $0x98] sm:$0xff]
        %v526 = vld [vmem:[#allocation9 + $0xa0] sm:$0xff]
        %v527 = vld [vmem:[#allocation9 + $0xa8] sm:$0xff]
        %v528 = vld [vmem:[#allocation9 + $0xb0] sm:$0xff]
        %v529 = vld [vmem:[#allocation9 + $0xb8] sm:$0xff]
        %v530 = vld [vmem:[#allocation9 + $0xc0] sm:$0xff]
        %v531 = vld [vmem:[#allocation9 + $0xc8] sm:$0xff]
        %v532 = vld [vmem:[#allocation9 + $0xd0] sm:$0xff]
        %v533 = vld [vmem:[#allocation9 + $0xd8] sm:$0xff]
        %v534 = vld [vmem:[#allocation9 + $0xe0] sm:$0xff]
        %v535 = vld [vmem:[#allocation9 + $0xe8] sm:$0xff]
        %v536 = vld [vmem:[#allocation9 + $0xf0] sm:$0xff]
        %v537 = vld [vmem:[#allocation9 + $0xf8] sm:$0xff]
        %v538 = vld [vmem:[#allocation2] sm:$0xff]
        %v539 = vld [vmem:[#allocation3] sm:$0xff]
        %v540 = vpack.c.bf16 %v538, %v538
        %v573 = vunpack.c.l.b16 %v506
        %v574 = vunpack.c.h.b16 %v506
        %v575 = vunpack.c.l.b16 %v507
        %v576 = vunpack.c.h.b16 %v507
        %v577 = vunpack.c.l.b16 %v508
        %v578 = vunpack.c.h.b16 %v508
        %v579 = vunpack.c.l.b16 %v509
        %v580 = vunpack.c.h.b16 %v509
        %v581 = vunpack.c.l.b16 %v510
        %v582 = vunpack.c.h.b16 %v510
        %v583 = vunpack.c.l.b16 %v511
        %v584 = vunpack.c.h.b16 %v511
        %v585 = vunpack.c.l.b16 %v512
        %v586 = vunpack.c.h.b16 %v512
        %v587 = vunpack.c.l.b16 %v513
        %v588 = vunpack.c.h.b16 %v513
        %v589 = vunpack.c.l.b16 %v514
        %v590 = vunpack.c.h.b16 %v514
        %v591 = vunpack.c.l.b16 %v515
        %v592 = vunpack.c.h.b16 %v515
        %v593 = vunpack.c.l.b16 %v516
        %v594 = vunpack.c.h.b16 %v516
        %v595 = vunpack.c.l.b16 %v517
        %v596 = vunpack.c.h.b16 %v517
        %v597 = vunpack.c.l.b16 %v518
        %v598 = vunpack.c.h.b16 %v518
        %v599 = vunpack.c.l.b16 %v519
        %v600 = vunpack.c.h.b16 %v519
        %v601 = vunpack.c.l.b16 %v520
        %v602 = vunpack.c.h.b16 %v520
        %v603 = vunpack.c.l.b16 %v521
        %v604 = vunpack.c.h.b16 %v521
        %v605 = vunpack.c.l.b16 %v522
        %v606 = vunpack.c.h.b16 %v522
        %v607 = vunpack.c.l.b16 %v523
        %v608 = vunpack.c.h.b16 %v523
        %v609 = vunpack.c.l.b16 %v524
        %v610 = vunpack.c.h.b16 %v524
        %v611 = vunpack.c.l.b16 %v525
        %v612 = vunpack.c.h.b16 %v525
        %v613 = vunpack.c.l.b16 %v526
        %v614 = vunpack.c.h.b16 %v526
        %v615 = vunpack.c.l.b16 %v527
        %v616 = vunpack.c.h.b16 %v527
        %v617 = vunpack.c.l.b16 %v528
        %v618 = vunpack.c.h.b16 %v528
        %v619 = vunpack.c.l.b16 %v529
        %v620 = vunpack.c.h.b16 %v529
        %v621 = vunpack.c.l.b16 %v530
        %v622 = vunpack.c.h.b16 %v530
        %v623 = vunpack.c.l.b16 %v531
        %v624 = vunpack.c.h.b16 %v531
        %v625 = vunpack.c.l.b16 %v532
        %v626 = vunpack.c.h.b16 %v532
        %v627 = vunpack.c.l.b16 %v533
        %v628 = vunpack.c.h.b16 %v533
        %v629 = vunpack.c.l.b16 %v534
        %v630 = vunpack.c.h.b16 %v534
        %v631 = vunpack.c.l.b16 %v535
        %v632 = vunpack.c.h.b16 %v535
        %v633 = vunpack.c.l.b16 %v536
        %v634 = vunpack.c.h.b16 %v536
        %v635 = vunpack.c.l.b16 %v537
        %v636 = vunpack.c.h.b16 %v537
        %v637 = vpack.c.b16 %v577, %v573
        %v638 = vpack.c.b16 %v578, %v574
        %v639 = vpack.c.b16 %v579, %v575
        %v640 = vpack.c.b16 %v580, %v576
        %v641 = vpack.c.b16 %v585, %v581
        %v642 = vpack.c.b16 %v586, %v582
        %v643 = vpack.c.b16 %v587, %v583
        %v644 = vpack.c.b16 %v588, %v584
        %v645 = vpack.c.b16 %v593, %v589
        %v646 = vpack.c.b16 %v594, %v590
        %v647 = vpack.c.b16 %v595, %v591
        %v648 = vpack.c.b16 %v596, %v592
        %v649 = vpack.c.b16 %v601, %v597
        %v650 = vpack.c.b16 %v602, %v598
        %v651 = vpack.c.b16 %v603, %v599
        %v652 = vpack.c.b16 %v604, %v600
        %v653 = vpack.c.b16 %v609, %v605
        %v654 = vpack.c.b16 %v610, %v606
        %v655 = vpack.c.b16 %v611, %v607
        %v656 = vpack.c.b16 %v612, %v608
        %v657 = vpack.c.b16 %v617, %v613
        %v658 = vpack.c.b16 %v618, %v614
        %v659 = vpack.c.b16 %v619, %v615
        %v660 = vpack.c.b16 %v620, %v616
        %v661 = vpack.c.b16 %v625, %v621
        %v662 = vpack.c.b16 %v626, %v622
        %v663 = vpack.c.b16 %v627, %v623
        %v664 = vpack.c.b16 %v628, %v624
        %v665 = vpack.c.b16 %v633, %v629
        %v666 = vpack.c.b16 %v634, %v630
        %v667 = vpack.c.b16 %v635, %v631
        %v668 = vpack.c.b16 %v636, %v632
        %701 = vmatprep.subr.bf16.mxu0 %v666
        %702 = vmatpush1.bf16.msra.mxu0 %v665
        %703 = vmatprep.subr.bf16.mxu0 %v662
        %704 = vmatpush1.bf16.msra.mxu0 %v661
        %705 = vmatprep.subr.bf16.mxu0 %v658
        %706 = vmatpush1.bf16.msra.mxu0 %v657
        %707 = vmatprep.subr.bf16.mxu0 %v654
        %708 = vmatpush1.bf16.msra.mxu0 %v653
        %709 = vmatprep.subr.bf16.mxu0 %v650
        %710 = vmatpush1.bf16.msra.mxu0 %v649
        %711 = vmatprep.subr.bf16.mxu0 %v646
        %712 = vmatpush1.bf16.msra.mxu0 %v645
        %713 = vmatprep.subr.bf16.mxu0 %v642
        %714 = vmatpush1.bf16.msra.mxu0 %v641
        %715 = vmatprep.subr.bf16.mxu0 %v638
        %716 = vmatpush1.bf16.msra.mxu0 %v637
        %717 = vmatprep.subr.bf16.mxu0 0
        %718 = vmatpush2.bf16.msra.mxu0 0
        %719 = vmatprep.subr.bf16.mxu0 0
        %720 = vmatpush2.bf16.msra.mxu0 0
        %721 = vmatprep.subr.bf16.mxu0 0
        %722 = vmatpush2.bf16.msra.mxu0 0
        %723 = vmatprep.subr.bf16.mxu0 0
        %724 = vmatpush2.bf16.msra.mxu0 0
        %725 = vmatprep.subr.bf16.mxu0 0
        %726 = vmatpush2.bf16.msra.mxu0 0
        %727 = vmatprep.subr.bf16.mxu0 0
        %728 = vmatpush2.bf16.msra.mxu0 0
        %729 = vmatprep.subr.bf16.mxu0 0
        %730 = vmatpush2.bf16.msra.mxu0 0
        %731 = vmatprep.subr.bf16.mxu0 0
        %732 = vmatpush2.bf16.msra.mxu0 0
        %733 = vmatprep.mubr.bf16.mxu0 0
        %734 = vmatmul.mubr.bf16.gmra.mxu0 %v540
        %v735 = vpop.f32.mrf.mxu0
        %v736 = vadd.f32 0.0, %v735
        %v737 = vpop.f32.mrf.mxu0
        %v738 = vadd.f32 0.0, %v737
        %v739 = vpop.f32.mrf.mxu0
        %v740 = vpop.f32.mrf.mxu0
        %741 = vdwg.mxu0
        %742 = vmatprep.subr.bf16.mxu0 %v668
        %743 = vmatpush1.bf16.msra.mxu0 %v667
        %744 = vmatprep.subr.bf16.mxu0 %v664
        %745 = vmatpush1.bf16.msra.mxu0 %v663
        %746 = vmatprep.subr.bf16.mxu0 %v660
        %747 = vmatpush1.bf16.msra.mxu0 %v659
        %748 = vmatprep.subr.bf16.mxu0 %v656
        %749 = vmatpush1.bf16.msra.mxu0 %v655
        %750 = vmatprep.subr.bf16.mxu0 %v652
        %751 = vmatpush1.bf16.msra.mxu0 %v651
        %752 = vmatprep.subr.bf16.mxu0 %v648
        %753 = vmatpush1.bf16.msra.mxu0 %v647
        %754 = vmatprep.subr.bf16.mxu0 %v644
        %755 = vmatpush1.bf16.msra.mxu0 %v643
        %756 = vmatprep.subr.bf16.mxu0 %v640
        %757 = vmatpush1.bf16.msra.mxu0 %v639
        %758 = vmatprep.subr.bf16.mxu0 0
        %759 = vmatpush2.bf16.msra.mxu0 0
        %760 = vmatprep.subr.bf16.mxu0 0
        %761 = vmatpush2.bf16.msra.mxu0 0
        %762 = vmatprep.subr.bf16.mxu0 0
        %763 = vmatpush2.bf16.msra.mxu0 0
        %764 = vmatprep.subr.bf16.mxu0 0
        %765 = vmatpush2.bf16.msra.mxu0 0
        %766 = vmatprep.subr.bf16.mxu0 0
        %767 = vmatpush2.bf16.msra.mxu0 0
        %768 = vmatprep.subr.bf16.mxu0 0
        %769 = vmatpush2.bf16.msra.mxu0 0
        %770 = vmatprep.subr.bf16.mxu0 0
        %771 = vmatpush2.bf16.msra.mxu0 0
        %772 = vmatprep.subr.bf16.mxu0 0
        %773 = vmatpush2.bf16.msra.mxu0 0
        %774 = vmatprep.mubr.bf16.mxu0 0
        %775 = vmatmul.mubr.bf16.gmra.mxu0 %v540
        %v776 = vpop.f32.mrf.mxu0
        %v777 = vadd.f32 0.0, %v776
        %v778 = vpop.f32.mrf.mxu0
        %v779 = vadd.f32 0.0, %v778
        %v780 = vpop.f32.mrf.mxu0
        %v781 = vpop.f32.mrf.mxu0
        %782 = vdwg.mxu0
        %v783 = vadd.f32 %v435, %v736
        %v784 = vadd.f32 %v437, %v738
        %v785 = vadd.f32 %v488, %v777
        %v786 = vadd.f32 %v490, %v779
        %v787 = vxor.u32 %v783, 2147483648
        %v788 = vmul.f32 %v787, 1.442695
        %v789 = vpow.pop %v788
        %v790 = vadd.f32 %v789, 1.0
        %v791 = vrcp.pop %v790
        %v792 = vmul.f32 1.0, %v791
        %v793 = vxor.u32 %v784, 2147483648
        %v794 = vmul.f32 %v793, 1.442695
        %v795 = vpow.pop %v794
        %v796 = vadd.f32 %v795, 1.0
        %v797 = vrcp.pop %v796
        %v798 = vmul.f32 1.0, %v797
        %v799 = vtanh.pop %v785
        %v800 = vxor.u32 %v786, 2147483648
        %v801 = vmul.f32 %v800, 1.442695
        %v802 = vpow.pop %v801
        %v803 = vadd.f32 %v802, 1.0
        %v804 = vrcp.pop %v803
        %v805 = vmul.f32 1.0, %v804
        %v806 = vmul.f32 %v798, %v539
        %v807 = vmul.f32 %v792, %v799
        %v808 = vadd.f32 %v806, %v807
        %v809 = vtanh.pop %v808
        %v810 = vmul.f32 %v805, %v809
        %v811 = vpack.c.bf16 %v810, %v810
        %812 = vmatprep.subr.bf16.mxu0 %v666
        %813 = vmatpush1.bf16.msra.mxu0 %v665
        %814 = vmatprep.subr.bf16.mxu0 %v662
        %815 = vmatpush1.bf16.msra.mxu0 %v661
        %816 = vmatprep.subr.bf16.mxu0 %v658
        %817 = vmatpush1.bf16.msra.mxu0 %v657
        %818 = vmatprep.subr.bf16.mxu0 %v654
        %819 = vmatpush1.bf16.msra.mxu0 %v653
        %820 = vmatprep.subr.bf16.mxu0 %v650
        %821 = vmatpush1.bf16.msra.mxu0 %v649
        %822 = vmatprep.subr.bf16.mxu0 %v646
        %823 = vmatpush1.bf16.msra.mxu0 %v645
        %824 = vmatprep.subr.bf16.mxu0 %v642
        %825 = vmatpush1.bf16.msra.mxu0 %v641
        %826 = vmatprep.subr.bf16.mxu0 %v638
        %827 = vmatpush1.bf16.msra.mxu0 %v637
        %828 = vmatprep.subr.bf16.mxu0 0
        %829 = vmatpush2.bf16.msra.mxu0 0
        %830 = vmatprep.subr.bf16.mxu0 0
        %831 = vmatpush2.bf16.msra.mxu0 0
        %832 = vmatprep.subr.bf16.mxu0 0
        %833 = vmatpush2.bf16.msra.mxu0 0
        %834 = vmatprep.subr.bf16.mxu0 0
        %835 = vmatpush2.bf16.msra.mxu0 0
        %836 = vmatprep.subr.bf16.mxu0 0
        %837 = vmatpush2.bf16.msra.mxu0 0
        %838 = vmatprep.subr.bf16.mxu0 0
        %839 = vmatpush2.bf16.msra.mxu0 0
        %840 = vmatprep.subr.bf16.mxu0 0
        %841 = vmatpush2.bf16.msra.mxu0 0
        %842 = vmatprep.subr.bf16.mxu0 0
        %843 = vmatpush2.bf16.msra.mxu0 0
        %844 = vmatprep.mubr.bf16.mxu0 0
        %845 = vmatmul.mubr.bf16.gmra.mxu0 %v811
        %v846 = vpop.f32.mrf.mxu0
        %v847 = vadd.f32 0.0, %v846
        %v848 = vpop.f32.mrf.mxu0
        %v849 = vadd.f32 0.0, %v848
        %v850 = vpop.f32.mrf.mxu0
        %v851 = vpop.f32.mrf.mxu0
        %852 = vdwg.mxu0
        %853 = vmatprep.subr.bf16.mxu0 %v668
        %854 = vmatpush1.bf16.msra.mxu0 %v667
        %855 = vmatprep.subr.bf16.mxu0 %v664
        %856 = vmatpush1.bf16.msra.mxu0 %v663
        %857 = vmatprep.subr.bf16.mxu0 %v660
        %858 = vmatpush1.bf16.msra.mxu0 %v659
        %859 = vmatprep.subr.bf16.mxu0 %v656
        %860 = vmatpush1.bf16.msra.mxu0 %v655
        %861 = vmatprep.subr.bf16.mxu0 %v652
        %862 = vmatpush1.bf16.msra.mxu0 %v651
        %863 = vmatprep.subr.bf16.mxu0 %v648
        %864 = vmatpush1.bf16.msra.mxu0 %v647
        %865 = vmatprep.subr.bf16.mxu0 %v644
        %866 = vmatpush1.bf16.msra.mxu0 %v643
        %867 = vmatprep.subr.bf16.mxu0 %v640
        %868 = vmatpush1.bf16.msra.mxu0 %v639
        %869 = vmatprep.subr.bf16.mxu0 0
        %870 = vmatpush2.bf16.msra.mxu0 0
        %871 = vmatprep.subr.bf16.mxu0 0
        %872 = vmatpush2.bf16.msra.mxu0 0
        %873 = vmatprep.subr.bf16.mxu0 0
        %874 = vmatpush2.bf16.msra.mxu0 0
        %875 = vmatprep.subr.bf16.mxu0 0
        %876 = vmatpush2.bf16.msra.mxu0 0
        %877 = vmatprep.subr.bf16.mxu0 0
        %878 = vmatpush2.bf16.msra.mxu0 0
        %879 = vmatprep.subr.bf16.mxu0 0
        %880 = vmatpush2.bf16.msra.mxu0 0
        %881 = vmatprep.subr.bf16.mxu0 0
        %882 = vmatpush2.bf16.msra.mxu0 0
        %883 = vmatprep.subr.bf16.mxu0 0
        %884 = vmatpush2.bf16.msra.mxu0 0
        %885 = vmatprep.mubr.bf16.mxu0 0
        %886 = vmatmul.mubr.bf16.gmra.mxu0 %v811
        %v887 = vpop.f32.mrf.mxu0
        %v888 = vadd.f32 0.0, %v887
        %v889 = vpop.f32.mrf.mxu0
        %v890 = vadd.f32 0.0, %v889
        %v891 = vpop.f32.mrf.mxu0
        %v892 = vpop.f32.mrf.mxu0
        %893 = vdwg.mxu0
        %v894 = vadd.f32 %v439, %v847
        %v895 = vadd.f32 %v441, %v849
        %v896 = vadd.f32 %v492, %v888
        %v897 = vadd.f32 %v494, %v890
        %v898 = vxor.u32 %v894, 2147483648
        %v899 = vmul.f32 %v898, 1.442695
        %v900 = vpow.pop %v899
        %v901 = vadd.f32 %v900, 1.0
        %v902 = vrcp.pop %v901
        %v903 = vmul.f32 1.0, %v902
        %v904 = vxor.u32 %v895, 2147483648
        %v905 = vmul.f32 %v904, 1.442695
        %v906 = vpow.pop %v905
        %v907 = vadd.f32 %v906, 1.0
        %v908 = vrcp.pop %v907
        %v909 = vmul.f32 1.0, %v908
        %v910 = vtanh.pop %v896
        %v911 = vxor.u32 %v897, 2147483648
        %v912 = vmul.f32 %v911, 1.442695
        %v913 = vpow.pop %v912
        %v914 = vadd.f32 %v913, 1.0
        %v915 = vrcp.pop %v914
        %v916 = vmul.f32 1.0, %v915
        %v917 = vmul.f32 %v909, %v808
        %v918 = vmul.f32 %v903, %v910
        %v919 = vadd.f32 %v917, %v918
        %v920 = vtanh.pop %v919
        %v921 = vmul.f32 %v916, %v920
        %v922 = vpack.c.bf16 %v921, %v921
        %923 = vmatprep.subr.bf16.mxu0 %v666
        %924 = vmatpush1.bf16.msra.mxu0 %v665
        %925 = vmatprep.subr.bf16.mxu0 %v662
        %926 = vmatpush1.bf16.msra.mxu0 %v661
        %927 = vmatprep.subr.bf16.mxu0 %v658
        %928 = vmatpush1.bf16.msra.mxu0 %v657
        %929 = vmatprep.subr.bf16.mxu0 %v654
        %930 = vmatpush1.bf16.msra.mxu0 %v653
        %931 = vmatprep.subr.bf16.mxu0 %v650
        %932 = vmatpush1.bf16.msra.mxu0 %v649
        %933 = vmatprep.subr.bf16.mxu0 %v646
        %934 = vmatpush1.bf16.msra.mxu0 %v645
        %935 = vmatprep.subr.bf16.mxu0 %v642
        %936 = vmatpush1.bf16.msra.mxu0 %v641
        %937 = vmatprep.subr.bf16.mxu0 %v638
        %938 = vmatpush1.bf16.msra.mxu0 %v637
        %939 = vmatprep.subr.bf16.mxu0 0
        %940 = vmatpush2.bf16.msra.mxu0 0
        %941 = vmatprep.subr.bf16.mxu0 0
        %942 = vmatpush2.bf16.msra.mxu0 0
        %943 = vmatprep.subr.bf16.mxu0 0
        %944 = vmatpush2.bf16.msra.mxu0 0
        %945 = vmatprep.subr.bf16.mxu0 0
        %946 = vmatpush2.bf16.msra.mxu0 0
        %947 = vmatprep.subr.bf16.mxu0 0
        %948 = vmatpush2.bf16.msra.mxu0 0
        %949 = vmatprep.subr.bf16.mxu0 0
        %950 = vmatpush2.bf16.msra.mxu0 0
        %951 = vmatprep.subr.bf16.mxu0 0
        %952 = vmatpush2.bf16.msra.mxu0 0
        %953 = vmatprep.subr.bf16.mxu0 0
        %954 = vmatpush2.bf16.msra.mxu0 0
        %955 = vmatprep.mubr.bf16.mxu0 0
        %956 = vmatmul.mubr.bf16.gmra.mxu0 %v922
        %v957 = vpop.f32.mrf.mxu0
        %v958 = vadd.f32 0.0, %v957
        %v959 = vpop.f32.mrf.mxu0
        %v960 = vadd.f32 0.0, %v959
        %v961 = vpop.f32.mrf.mxu0
        %v962 = vpop.f32.mrf.mxu0
        %963 = vdwg.mxu0
        %964 = vmatprep.subr.bf16.mxu0 %v668
        %965 = vmatpush1.bf16.msra.mxu0 %v667
        %966 = vmatprep.subr.bf16.mxu0 %v664
        %967 = vmatpush1.bf16.msra.mxu0 %v663
        %968 = vmatprep.subr.bf16.mxu0 %v660
        %969 = vmatpush1.bf16.msra.mxu0 %v659
        %970 = vmatprep.subr.bf16.mxu0 %v656
        %971 = vmatpush1.bf16.msra.mxu0 %v655
        %972 = vmatprep.subr.bf16.mxu0 %v652
        %973 = vmatpush1.bf16.msra.mxu0 %v651
        %974 = vmatprep.subr.bf16.mxu0 %v648
        %975 = vmatpush1.bf16.msra.mxu0 %v647
        %976 = vmatprep.subr.bf16.mxu0 %v644
        %977 = vmatpush1.bf16.msra.mxu0 %v643
        %978 = vmatprep.subr.bf16.mxu0 %v640
        %979 = vmatpush1.bf16.msra.mxu0 %v639
        %980 = vmatprep.subr.bf16.mxu0 0
        %981 = vmatpush2.bf16.msra.mxu0 0
        %982 = vmatprep.subr.bf16.mxu0 0
        %983 = vmatpush2.bf16.msra.mxu0 0
        %984 = vmatprep.subr.bf16.mxu0 0
        %985 = vmatpush2.bf16.msra.mxu0 0
        %986 = vmatprep.subr.bf16.mxu0 0
        %987 = vmatpush2.bf16.msra.mxu0 0
        %988 = vmatprep.subr.bf16.mxu0 0
        %989 = vmatpush2.bf16.msra.mxu0 0
        %990 = vmatprep.subr.bf16.mxu0 0
        %991 = vmatpush2.bf16.msra.mxu0 0
        %992 = vmatprep.subr.bf16.mxu0 0
        %993 = vmatpush2.bf16.msra.mxu0 0
        %994 = vmatprep.subr.bf16.mxu0 0
        %995 = vmatpush2.bf16.msra.mxu0 0
        %996 = vmatprep.mubr.bf16.mxu0 0
        %997 = vmatmul.mubr.bf16.gmra.mxu0 %v922
        %v998 = vpop.f32.mrf.mxu0
        %v999 = vadd.f32 0.0, %v998
        %v1000 = vpop.f32.mrf.mxu0
        %v1001 = vadd.f32 0.0, %v1000
        %v1002 = vpop.f32.mrf.mxu0
        %v1003 = vpop.f32.mrf.mxu0
        %1004 = vdwg.mxu0
        %v1005 = vadd.f32 %v445, %v958
        %v1006 = vadd.f32 %v447, %v960
        %v1007 = vadd.f32 %v498, %v999
        %v1008 = vadd.f32 %v500, %v1001
        %v1009 = vxor.u32 %v1005, 2147483648
        %v1010 = vmul.f32 %v1009, 1.442695
        %v1011 = vpow.pop %v1010
        %v1012 = vadd.f32 %v1011, 1.0
        %v1013 = vrcp.pop %v1012
        %v1014 = vmul.f32 1.0, %v1013
        %v1015 = vxor.u32 %v1006, 2147483648
        %v1016 = vmul.f32 %v1015, 1.442695
        %v1017 = vpow.pop %v1016
        %v1018 = vadd.f32 %v1017, 1.0
        %v1019 = vrcp.pop %v1018
        %v1020 = vmul.f32 1.0, %v1019
        %v1021 = vtanh.pop %v1007
        %v1022 = vxor.u32 %v1008, 2147483648
        %v1023 = vmul.f32 %v1022, 1.442695
        %v1024 = vpow.pop %v1023
        %v1025 = vadd.f32 %v1024, 1.0
        %v1026 = vrcp.pop %v1025
        %v1027 = vmul.f32 1.0, %v1026
        %v1028 = vmul.f32 %v1020, %v919
        %v1029 = vmul.f32 %v1014, %v1021
        %v1030 = vadd.f32 %v1028, %v1029
        %v1031 = vtanh.pop %v1030
        %v1032 = vmul.f32 %v1027, %v1031
        %v1033 = vpack.c.bf16 %v1032, %v1032
        %1034 = vmatprep.subr.bf16.mxu0 %v666
        %1035 = vmatpush1.bf16.msra.mxu0 %v665
        %1036 = vmatprep.subr.bf16.mxu0 %v662
        %1037 = vmatpush1.bf16.msra.mxu0 %v661
        %1038 = vmatprep.subr.bf16.mxu0 %v658
        %1039 = vmatpush1.bf16.msra.mxu0 %v657
        %1040 = vmatprep.subr.bf16.mxu0 %v654
        %1041 = vmatpush1.bf16.msra.mxu0 %v653
        %1042 = vmatprep.subr.bf16.mxu0 %v650
        %1043 = vmatpush1.bf16.msra.mxu0 %v649
        %1044 = vmatprep.subr.bf16.mxu0 %v646
        %1045 = vmatpush1.bf16.msra.mxu0 %v645
        %1046 = vmatprep.subr.bf16.mxu0 %v642
        %1047 = vmatpush1.bf16.msra.mxu0 %v641
        %1048 = vmatprep.subr.bf16.mxu0 %v638
        %1049 = vmatpush1.bf16.msra.mxu0 %v637
        %1050 = vmatprep.subr.bf16.mxu0 0
        %1051 = vmatpush2.bf16.msra.mxu0 0
        %1052 = vmatprep.subr.bf16.mxu0 0
        %1053 = vmatpush2.bf16.msra.mxu0 0
        %1054 = vmatprep.subr.bf16.mxu0 0
        %1055 = vmatpush2.bf16.msra.mxu0 0
        %1056 = vmatprep.subr.bf16.mxu0 0
        %1057 = vmatpush2.bf16.msra.mxu0 0
        %1058 = vmatprep.subr.bf16.mxu0 0
        %1059 = vmatpush2.bf16.msra.mxu0 0
        %1060 = vmatprep.subr.bf16.mxu0 0
        %1061 = vmatpush2.bf16.msra.mxu0 0
        %1062 = vmatprep.subr.bf16.mxu0 0
        %1063 = vmatpush2.bf16.msra.mxu0 0
        %1064 = vmatprep.subr.bf16.mxu0 0
        %1065 = vmatpush2.bf16.msra.mxu0 0
        %1066 = vmatprep.mubr.bf16.mxu0 0
        %1067 = vmatmul.mubr.bf16.gmra.mxu0 %v1033
        %v1068 = vpop.f32.mrf.mxu0
        %v1069 = vadd.f32 0.0, %v1068
        %v1070 = vpop.f32.mrf.mxu0
        %v1071 = vadd.f32 0.0, %v1070
        %v1072 = vpop.f32.mrf.mxu0
        %v1073 = vpop.f32.mrf.mxu0
        %1074 = vdwg.mxu0
        %1075 = vmatprep.subr.bf16.mxu0 %v668
        %1076 = vmatpush1.bf16.msra.mxu0 %v667
        %1077 = vmatprep.subr.bf16.mxu0 %v664
        %1078 = vmatpush1.bf16.msra.mxu0 %v663
        %1079 = vmatprep.subr.bf16.mxu0 %v660
        %1080 = vmatpush1.bf16.msra.mxu0 %v659
        %1081 = vmatprep.subr.bf16.mxu0 %v656
        %1082 = vmatpush1.bf16.msra.mxu0 %v655
        %1083 = vmatprep.subr.bf16.mxu0 %v652
        %1084 = vmatpush1.bf16.msra.mxu0 %v651
        %1085 = vmatprep.subr.bf16.mxu0 %v648
        %1086 = vmatpush1.bf16.msra.mxu0 %v647
        %1087 = vmatprep.subr.bf16.mxu0 %v644
        %1088 = vmatpush1.bf16.msra.mxu0 %v643
        %1089 = vmatprep.subr.bf16.mxu0 %v640
        %1090 = vmatpush1.bf16.msra.mxu0 %v639
        %1091 = vmatprep.subr.bf16.mxu0 0
        %1092 = vmatpush2.bf16.msra.mxu0 0
        %1093 = vmatprep.subr.bf16.mxu0 0
        %1094 = vmatpush2.bf16.msra.mxu0 0
        %1095 = vmatprep.subr.bf16.mxu0 0
        %1096 = vmatpush2.bf16.msra.mxu0 0
        %1097 = vmatprep.subr.bf16.mxu0 0
        %1098 = vmatpush2.bf16.msra.mxu0 0
        %1099 = vmatprep.subr.bf16.mxu0 0
        %1100 = vmatpush2.bf16.msra.mxu0 0
        %1101 = vmatprep.subr.bf16.mxu0 0
        %1102 = vmatpush2.bf16.msra.mxu0 0
        %1103 = vmatprep.subr.bf16.mxu0 0
        %1104 = vmatpush2.bf16.msra.mxu0 0
        %1105 = vmatprep.subr.bf16.mxu0 0
        %1106 = vmatpush2.bf16.msra.mxu0 0
        %1107 = vmatprep.mubr.bf16.mxu0 0
        %1108 = vmatmul.mubr.bf16.gmra.mxu0 %v1033
        %v1109 = vpop.f32.mrf.mxu0
        %v1110 = vadd.f32 0.0, %v1109
        %v1111 = vpop.f32.mrf.mxu0
        %v1112 = vadd.f32 0.0, %v1111
        %v1113 = vpop.f32.mrf.mxu0
        %v1114 = vpop.f32.mrf.mxu0
        %1115 = vdwg.mxu0
        %v1116 = vadd.f32 %v449, %v1069
        %v1117 = vadd.f32 %v451, %v1071
        %v1118 = vadd.f32 %v502, %v1110
        %v1119 = vadd.f32 %v504, %v1112
        %v1120 = vxor.u32 %v1116, 2147483648
        %v1121 = vmul.f32 %v1120, 1.442695
        %v1122 = vpow.pop %v1121
        %v1123 = vadd.f32 %v1122, 1.0
        %v1124 = vrcp.pop %v1123
        %v1125 = vmul.f32 1.0, %v1124
        %v1126 = vxor.u32 %v1117, 2147483648
        %v1127 = vmul.f32 %v1126, 1.442695
        %v1128 = vpow.pop %v1127
        %v1129 = vadd.f32 %v1128, 1.0
        %v1130 = vrcp.pop %v1129
        %v1131 = vmul.f32 1.0, %v1130
        %v1132 = vtanh.pop %v1118
        %v1133 = vxor.u32 %v1119, 2147483648
        %v1134 = vmul.f32 %v1133, 1.442695
        %v1135 = vpow.pop %v1134
        %v1136 = vadd.f32 %v1135, 1.0
        %v1137 = vrcp.pop %v1136
        %v1138 = vmul.f32 1.0, %v1137
        %v1139 = vmul.f32 %v1131, %v1030
        %v1140 = vmul.f32 %v1125, %v1132
        %v1141 = vadd.f32 %v1139, %v1140
        %v1142 = vtanh.pop %v1141
        %v1143 = vmul.f32 %v1138, %v1142
        %1144 = vst [vmem:[#allocation2] sm:$0xff] %v1143
        %1145 = vst [vmem:[#allocation3] sm:$0xff] %v1141
        %p1146 = scmp.eq.s32.totalorder %s23, 1
        // Predicated region
        $region65: #{tpu_custom_call.1} parent=43 // pred_check
          %p1147 = pneg %p1146
        $region66: #{tpu_custom_call.1} parent=43 // pred_check_branch
          %1149 = sbr.rel (%p1147) target = $region68
        $region67: #{tpu_custom_call.1} parent=43 // pred_region
          %v1150 = vpack.c.bf16 %v1143, %v1143
          %v1151 = vld [vmem:[#allocation10] sm:$0xf]
          %v1152 = vld [vmem:[#allocation10 + $0x4] sm:$0xf]
          %v1153 = vld [vmem:[#allocation10 + $0x8] sm:$0xf]
          %v1154 = vld [vmem:[#allocation10 + $0xc] sm:$0xf]
          %v1155 = vld [vmem:[#allocation10 + $0x10] sm:$0xf]
          %v1156 = vld [vmem:[#allocation10 + $0x14] sm:$0xf]
          %v1157 = vld [vmem:[#allocation10 + $0x18] sm:$0xf]
          %v1158 = vld [vmem:[#allocation10 + $0x1c] sm:$0xf]
          %v1159 = vld [vmem:[#allocation10 + $0x20] sm:$0xf]
          %v1160 = vld [vmem:[#allocation10 + $0x24] sm:$0xf]
          %v1161 = vld [vmem:[#allocation10 + $0x28] sm:$0xf]
          %v1162 = vld [vmem:[#allocation10 + $0x2c] sm:$0xf]
          %v1163 = vld [vmem:[#allocation10 + $0x30] sm:$0xf]
          %v1164 = vld [vmem:[#allocation10 + $0x34] sm:$0xf]
          %v1165 = vld [vmem:[#allocation10 + $0x38] sm:$0xf]
          %v1166 = vld [vmem:[#allocation10 + $0x3c] sm:$0xf]
          %v1167 = vld [vmem:[%s5] sm:$0x1]
          %v1169 = vlaneseq
          %v1170 = vshrl.u32 %v1169, 7
          %v1171 = vsub.s32 0, %v1170
          %v1172 = vrot.slane %v1167, %v1171
          %v1190 = vunpack.c.l.b16 %v1151
          %v1191 = vunpack.c.l.b16 %v1152
          %v1192 = vunpack.c.l.b16 %v1153
          %v1193 = vunpack.c.l.b16 %v1154
          %v1194 = vunpack.c.l.b16 %v1155
          %v1195 = vunpack.c.l.b16 %v1156
          %v1196 = vunpack.c.l.b16 %v1157
          %v1197 = vunpack.c.l.b16 %v1158
          %v1198 = vunpack.c.l.b16 %v1159
          %v1199 = vunpack.c.l.b16 %v1160
          %v1200 = vunpack.c.l.b16 %v1161
          %v1201 = vunpack.c.l.b16 %v1162
          %v1202 = vunpack.c.l.b16 %v1163
          %v1203 = vunpack.c.l.b16 %v1164
          %v1204 = vunpack.c.l.b16 %v1165
          %v1205 = vunpack.c.l.b16 %v1166
          %v1206 = vpack.c.b16 %v1191, %v1190
          %v1207 = vpack.c.b16 %v1193, %v1192
          %v1208 = vpack.c.b16 %v1195, %v1194
          %v1209 = vpack.c.b16 %v1197, %v1196
          %v1210 = vpack.c.b16 %v1199, %v1198
          %v1211 = vpack.c.b16 %v1201, %v1200
          %v1212 = vpack.c.b16 %v1203, %v1202
          %v1213 = vpack.c.b16 %v1205, %v1204
          %1222 = vmatprep.subr.bf16.mxu0 0
          %1223 = vmatpush1.bf16.msra.mxu0 %v1213
          %1224 = vmatprep.subr.bf16.mxu0 0
          %1225 = vmatpush1.bf16.msra.mxu0 %v1212
          %1226 = vmatprep.subr.bf16.mxu0 0
          %1227 = vmatpush1.bf16.msra.mxu0 %v1211
          %1228 = vmatprep.subr.bf16.mxu0 0
          %1229 = vmatpush1.bf16.msra.mxu0 %v1210
          %1230 = vmatprep.subr.bf16.mxu0 0
          %1231 = vmatpush1.bf16.msra.mxu0 %v1209
          %1232 = vmatprep.subr.bf16.mxu0 0
          %1233 = vmatpush1.bf16.msra.mxu0 %v1208
          %1234 = vmatprep.subr.bf16.mxu0 0
          %1235 = vmatpush1.bf16.msra.mxu0 %v1207
          %1236 = vmatprep.subr.bf16.mxu0 0
          %1237 = vmatpush1.bf16.msra.mxu0 %v1206
          %1238 = vmatprep.subr.bf16.mxu0 0
          %1239 = vmatpush2.bf16.msra.mxu0 0
          %1240 = vmatprep.subr.bf16.mxu0 0
          %1241 = vmatpush2.bf16.msra.mxu0 0
          %1242 = vmatprep.subr.bf16.mxu0 0
          %1243 = vmatpush2.bf16.msra.mxu0 0
          %1244 = vmatprep.subr.bf16.mxu0 0
          %1245 = vmatpush2.bf16.msra.mxu0 0
          %1246 = vmatprep.subr.bf16.mxu0 0
          %1247 = vmatpush2.bf16.msra.mxu0 0
          %1248 = vmatprep.subr.bf16.mxu0 0
          %1249 = vmatpush2.bf16.msra.mxu0 0
          %1250 = vmatprep.subr.bf16.mxu0 0
          %1251 = vmatpush2.bf16.msra.mxu0 0
          %1252 = vmatprep.subr.bf16.mxu0 0
          %1253 = vmatpush2.bf16.msra.mxu0 0
          %1254 = vmatprep.mubr.bf16.mxu0 0
          %1255 = vmatmul.mubr.bf16.gmra.mxu0 %v1150
          %v1256 = vpop.f32.mrf.mxu0
          %v1257 = vadd.f32 %v1172, %v1256
          %v1258 = vpop.f32.mrf.mxu0
          %v1259 = vpop.f32.mrf.mxu0
          %v1260 = vpop.f32.mrf.mxu0
          %1261 = vdwg.mxu0
          %1262 = vmax.xlane.f32.xlu0 %v1257
          %v1263 = vpop.xlane.xlu0 %1262
          %v1264 = vsub.f32 %v1257, %v1263
          %v1265 = vmul.f32 %v1264, 1.442695
          %v1266 = vpow.pop %v1265
          %1267 = vadd.xlane.f32.xlu0 %v1266
          %v1268 = vpop.xlane.xlu0 %1267
          %v1269 = vlog2.pop %v1268
          %v1270 = vmul.f32 %v1269, 0.6931472
          %v1271 = vadd.f32 %v1263, %v1270
          %v1272 = vsub.f32 %v1257, %v1271
          %1273 = vst [vmem:[#allocation12] sm:$0xff] %v1272
        $region68: #{tpu_custom_call.1} parent=43 // pred_fallthru
          _
        // Predicated region
        $region69: #{tpu_custom_call.1} parent=43 // pred_check
          %p1274 = pneg %p167
        $region70: #{tpu_custom_call.1} parent=43 // pred_check_branch
          %1276 = sbr.rel (%p1274) target = $region72
        $region71: #{tpu_custom_call.1} parent=43 // pred_region
          %s1278 = ssub.s32 128, 128
          %1279 = vsyncadd [#allocation6], %s1278
          %s1281 = sshll.u32 [#allocation12], 4
          %s1282 = int_to_ptr.vmem [resolvable:$true] %s1281
          %1284 = dma.vmem_to_hbm [thread:$0]  %s1282, 128, %s6, [#allocation6]
        $region72: #{tpu_custom_call.1} parent=43 // pred_fallthru
          _
        // Predicated region
        $region73: #{tpu_custom_call.1} parent=43 // pred_check
          %p1285 = pneg %p167
        $region74: #{tpu_custom_call.1} parent=43 // pred_check_branch
          %1287 = sbr.rel (%p1285) target = $region76
        $region75: #{tpu_custom_call.1} parent=43 // pred_region
          %1288 = dma.done [#allocation6], 128
        $region76: #{tpu_custom_call.1} parent=43 // pred_fallthru
          _
      $region44: #{tpu_custom_call.1} parent=5 // pred_fallthru
        _
      %p1289 = scmp.le.s32.totalorder 2, %s18
      // Predicated region
      $region77: #{tpu_custom_call.1} parent=5 // pred_check
        %p1290 = pneg %p1289
      $region78: #{tpu_custom_call.1} parent=5 // pred_check_branch
        %1292 = sbr.rel (%p1290) target = $region80
      $region79: #{tpu_custom_call.1} parent=5 // pred_region
        %s1293 = ssub.s32 %s18, 2
      $region80: #{tpu_custom_call.1} parent=5 // pred_fallthru
        _
    $region6: #{tpu_custom_call.1} parent=1 // loop_footer
      %s22 = sadd.s32 1, %s18
    $region7: #{tpu_custom_call.1} parent=1 // loop_footer_branch
      %17 = sbr.rel target = $region3
    $region8: #{tpu_custom_call.1} parent=1 // loop_exit
      _
    %1294 = vsyncpa [#allocation5], 1
    %s1295 = scalar_lea.sflag [#allocation5], 1
    %1296 = vsyncpa %s1295, 1
    %1297 = vsyncpa [#allocation8], 1
    %1298 = vsyncpa [#allocation11], 1
    %1299 = vsyncpa [#allocation6], 1
    %s1300 = scalar_lea.sflag [#allocation6], 1
    %1301 = vsyncpa %s1300, 1

</llo_original>
